<compile_context>
chip_gen: v7x
topology: tpu7x:2x2x1
jax: 0.10.0
libtpu: 0.0.40
codegen_flags: <defaults>
</compile_context>

<pallas_src>
import jax
import jax.numpy as jnp
from jax import lax
from jax.experimental import pallas as pl
from jax.experimental.pallas import tpu as pltpu


LANE = 128
GATE_ALIGN = 32                 # hidden width padded so 4*Fg is a multiple of 128
OUT_LANES = 128                 # lane-dense kernel output width
MXU_DTYPE = jnp.bfloat16        # MXU operand dtype (x, W_ih, W_hh, h-for-matmul)


def _round_up(x, m):
    return (x + m - 1) // m * m


def _pack_gate_cols(w_t, F, Fg):
    """(F, 4F) -> (Fg, 4*Fg): PyTorch gate blocks [i|f|g|o], each padded F->Fg."""
    out = jnp.zeros((Fg, 4 * Fg), w_t.dtype)
    for k in range(4):
        out = out.at[:F, k * Fg:k * Fg + F].set(w_t[:, k * F:(k + 1) * F])
    return out


def _pack_gate_bias(b, F, Fg):
    """(4F,) -> (4*Fg,): gate blocks at Fg-aligned offsets, padding zeros."""
    out = jnp.zeros((4 * Fg,), b.dtype)
    for k in range(4):
        out = out.at[k * Fg:k * Fg + F].set(b[k * F:(k + 1) * F])
    return out


def _make_kernel(feat_dim_real, Fg, S):
    G = 4 * Fg
    inv_2f = 1.0 / (2.0 * feat_dim_real)   # mean over the REAL 2F features

    def kernel(x_ref, wihf_ref, wihb_ref, whhf_ref, whhb_ref,
               bf_ref, bb_ref, out_ref, gf_ref, gb_ref):
        TN = x_ref.shape[1]

        # ---- hoisted input projection: one dot per direction, straight into the
        # gate scratch (bias folded) -- no concatenated f32 temporary ----
        x_flat = x_ref[...].reshape(S * TN, Fg)                          # bf16
        gf_ref[...] = (jnp.dot(x_flat, wihf_ref[...],
                               preferred_element_type=jnp.float32)
                       + bf_ref[...]).reshape(S, TN, G)
        gb_ref[...] = (jnp.dot(x_flat, wihb_ref[...],
                               preferred_element_type=jnp.float32)
                       + bb_ref[...]).reshape(S, TN, G)

        whh_f = whhf_ref[...]                                            # bf16
        whh_b = whhb_ref[...]                                            # bf16

        def cell(gin, h, c, whh):
            # bf16 MXU recurrence matmul with f32 accumulation
            gates = gin + jnp.dot(h.astype(MXU_DTYPE), whh,
                                  preferred_element_type=jnp.float32)    # (TN, G)
            sig = jax.nn.sigmoid(gates)        # one EUP pass over all packed lanes
            i = sig[:, 0 * Fg:1 * Fg]
            f = sig[:, 1 * Fg:2 * Fg]
            o = sig[:, 3 * Fg:4 * Fg]
            g = jnp.tanh(gates[:, 2 * Fg:3 * Fg])
            c_new = f * c + i * g                                        # f32
            h_new = o * jnp.tanh(c_new)
            return h_new, c_new

        def body(t, carry):
            h_f, c_f, h_b, c_b, acc = carry
            h_f, c_f = cell(gf_ref[t], h_f, c_f, whh_f)                  # forward
            h_b, c_b = cell(gb_ref[S - 1 - t], h_b, c_b, whh_b)          # backward
            # collapse both time accumulators into one (TN,1) cross-lane reduce
            acc = acc + jnp.sum(h_f + h_b, axis=-1, keepdims=True)
            return (h_f, c_f, h_b, c_b, acc)

        z = jnp.zeros((TN, Fg), jnp.float32)
        acc0 = jnp.zeros((TN, 1), jnp.float32)
        carry = lax.fori_loop(0, S, body, (z, z, z, z, acc0),
                              unroll=min(S, 8))
        acc = carry[4]

        row_scalar = acc * inv_2f                                        # (TN, 1)
        out_ref[...] = jnp.broadcast_to(row_scalar,
                                        out_ref.shape).astype(out_ref.dtype)

    return kernel


def lstm_aggregator_forward(neigh_ids, embedding_table, params, *, tile_n=512):
    """
    neigh_ids:       (N, S) int32 neighbor indices per node
    embedding_table: (V, F) float32 feature table (the `features` lookup)
    params:          dict with PyTorch-layout LSTM weights (see init below)
    returns:         (N, 2F) float32 (each row a broadcast scalar, per reference)
    """
    N, S = neigh_ids.shape
    V, F = embedding_table.shape
    Fg = _round_up(F, GATE_ALIGN)          # 4*Fg is a multiple of 128
    G = 4 * Fg

    # node tile: multiple of 16 (bf16 sublane packing); >=2 grid steps when N allows
    TILE_N = min(tile_n, _round_up(N, 16))
    if N > 16 and _round_up(N, TILE_N) // TILE_N < 2:
        TILE_N = _round_up((N + 1) // 2, 16)
    N_pad = _round_up(N, TILE_N)

    # --- weights: (4F,F) -> (F,4F) -> packed (Fg, 4Fg); matmul operands in bf16 ---
    wih_f = _pack_gate_cols(params["w_ih_f"].T, F, Fg).astype(MXU_DTYPE)
    wih_b = _pack_gate_cols(params["w_ih_b"].T, F, Fg).astype(MXU_DTYPE)
    whh_f = _pack_gate_cols(params["w_hh_f"].T, F, Fg).astype(MXU_DTYPE)
    whh_b = _pack_gate_cols(params["w_hh_b"].T, F, Fg).astype(MXU_DTYPE)
    b_f = _pack_gate_bias(params["b_ih_f"] + params["b_hh_f"],
                          F, Fg).reshape(1, G).astype(jnp.float32)
    b_b = _pack_gate_bias(params["b_ih_b"] + params["b_hh_b"],
                          F, Fg).reshape(1, G).astype(jnp.float32)

    # --- gather straight to time-major (S, N_pad, Fg) bf16 (no 128-lane padding) ---
    emb = embedding_table
    if Fg > F:
        emb = jnp.pad(emb, ((0, 0), (0, Fg - F)))
    emb_bf = emb.astype(MXU_DTYPE)
    ids_pad = jnp.pad(neigh_ids, ((0, N_pad - N), (0, 0)))       # pad rows -> id 0
    x_tm = emb_bf[ids_pad.T]                                     # (S, N_pad, Fg)

    kernel = _make_kernel(F, Fg, S)
    out_pad = pl.pallas_call(
        kernel,
        out_shape=jax.ShapeDtypeStruct((N_pad, OUT_LANES), jnp.float32),
        grid_spec=pltpu.PrefetchScalarGridSpec(
            num_scalar_prefetch=0,
            grid=(N_pad // TILE_N,),
            in_specs=[
                pl.BlockSpec((S, TILE_N, Fg), lambda i: (0, i, 0)),  # x tile
                pl.BlockSpec((Fg, G), lambda i: (0, 0)),             # W_ih fwd
                pl.BlockSpec((Fg, G), lambda i: (0, 0)),             # W_ih bwd
                pl.BlockSpec((Fg, G), lambda i: (0, 0)),             # W_hh fwd
                pl.BlockSpec((Fg, G), lambda i: (0, 0)),             # W_hh bwd
                pl.BlockSpec((1, G), lambda i: (0, 0)),              # bias fwd
                pl.BlockSpec((1, G), lambda i: (0, 0)),              # bias bwd
            ],
            out_specs=pl.BlockSpec((TILE_N, OUT_LANES), lambda i: (i, 0)),
            scratch_shapes=[
                pltpu.VMEM((S, TILE_N, G), jnp.float32),   # fwd gate pre-activations
                pltpu.VMEM((S, TILE_N, G), jnp.float32),   # bwd gate pre-activations
            ],
        ),
        compiler_params=pltpu.CompilerParams(
            dimension_semantics=("parallel",),
            vmem_limit_bytes=48 * 1024 * 1024,
        ),
    )(x_tm, wih_f, wih_b, whh_f, whh_b, b_f, b_b)

    # each output row is a constant scalar (sum over time, mean over 2F)
    return jnp.broadcast_to(out_pad[:N, :1], (N, 2 * F))


def init_lstm_params(key, feat_dim):
    """Deterministic init mimicking nn.LSTM: U(-1/sqrt(H), 1/sqrt(H)), H=feat_dim."""
    bound = 1.0 / jnp.sqrt(jnp.float32(feat_dim))
    names = ["w_ih_f", "w_hh_f", "b_ih_f", "b_hh_f",
             "w_ih_b", "w_hh_b", "b_ih_b", "b_hh_b"]
    shapes = [(4 * feat_dim, feat_dim), (4 * feat_dim, feat_dim),
              (4 * feat_dim,), (4 * feat_dim,)] * 2
    keys = jax.random.split(key, len(names))
    return {n: jax.random.uniform(k, s, jnp.float32, -bound, bound)
            for n, k, s in zip(names, keys, shapes)}


def lstm_agg_reference(neigh_ids, embedding_table, params):
    """Pure-JAX f32 reference of the module's forward (for numerics check)."""
    N, S = neigh_ids.shape
    F = embedding_table.shape[1]
    x = embedding_table[neigh_ids]                                   # (N, S, F)

    def run_dir(x_seq, wih, whh, b_ih, b_hh):
        def step(carry, x_t):
            h, c = carry
            gates = x_t @ wih.T + h @ whh.T + b_ih + b_hh
            i, f, g, o = jnp.split(gates, 4, axis=-1)
            i = jax.nn.sigmoid(i)
            f = jax.nn.sigmoid(f)
            g = jnp.tanh(g)
            o = jax.nn.sigmoid(o)
            c = f * c + i * g
            h = o * jnp.tanh(c)
            return (h, c), h
        init = (jnp.zeros((N, F), jnp.float32), jnp.zeros((N, F), jnp.float32))
        _, hs = lax.scan(step, init, jnp.transpose(x_seq, (1, 0, 2)))
        return hs                                                    # (S, N, F)

    hs_f = run_dir(x, params["w_ih_f"], params["w_hh_f"],
                   params["b_ih_f"], params["b_hh_f"])
    hs_b = run_dir(x[:, ::-1], params["w_ih_b"], params["w_hh_b"],
                   params["b_ih_b"], params["b_hh_b"])
    scalar = (jnp.sum(hs_f, axis=(0, 2)) + jnp.sum(hs_b, axis=(0, 2))) / (2.0 * F)
    return jnp.broadcast_to(scalar[:, None], (N, 2 * F))


if __name__ == "__main__":
    N = 8            # number of nodes
    S = 8            # num_sample neighbors per node
    F = 32           # feat_dim
    V = 64           # embedding table size

    key = jax.random.PRNGKey(0)
    k_emb, k_idx, k_lstm = jax.random.split(key, 3)

    embedding_table = jax.random.normal(k_emb, (V, F), jnp.float32)
    neigh_ids = jax.random.randint(k_idx, (N, S), 0, V, jnp.int32)
    params = init_lstm_params(k_lstm, F)

    out = lstm_aggregator_forward(neigh_ids, embedding_table, params)
    out = jax.block_until_ready(out)

    assert out.shape == (N, 2 * F)
    assert bool(jnp.all(jnp.isfinite(out)))
    # each output row is a broadcast scalar, per reference semantics
    assert bool(jnp.allclose(out, out[:, :1]))

    # numerics vs f32 pure-JAX reference (loose tol: bf16 MXU operands in kernel)
    ref = lstm_agg_reference(neigh_ids, embedding_table, params)
    assert bool(jnp.allclose(out, ref, rtol=5e-2, atol=1e-2))

    print("KERNEL_OK")
</pallas_src>

<mosaic_0001>
module attributes {stable_mosaic.version = 11 : i64} {
  func.func @kernel(%arg0: i32, %arg1: memref<8x16x32xbf16, #tpu.memory_space<vmem>>, %arg2: memref<32x128xbf16, #tpu.memory_space<vmem>>, %arg3: memref<32x128xbf16, #tpu.memory_space<vmem>>, %arg4: memref<32x128xbf16, #tpu.memory_space<vmem>>, %arg5: memref<32x128xbf16, #tpu.memory_space<vmem>>, %arg6: memref<1x128xf32, #tpu.memory_space<vmem>>, %arg7: memref<1x128xf32, #tpu.memory_space<vmem>>, %arg8: memref<16x128xf32, #tpu.memory_space<vmem>>, %arg9: memref<8x16x128xf32, #tpu.memory_space<vmem>>, %arg10: memref<8x16x128xf32, #tpu.memory_space<vmem>>) attributes {dimension_semantics = [#tpu.dimension_semantics<parallel>], iteration_bounds = array<i64: 1>, scalar_prefetch = 0 : i64, scratch_operands = 2 : i64, tpu.core_type = #tpu.core_type<tc>, window_params = [{transform_indices = @transform_0, window_bounds = array<i64: 8, 16, 32>}, {pipeline_mode = #tpu.pipeline_mode<synchronous>, transform_indices = @transform_1, window_bounds = array<i64: 32, 128>}, {pipeline_mode = #tpu.pipeline_mode<synchronous>, transform_indices = @transform_2, window_bounds = array<i64: 32, 128>}, {pipeline_mode = #tpu.pipeline_mode<synchronous>, transform_indices = @transform_3, window_bounds = array<i64: 32, 128>}, {pipeline_mode = #tpu.pipeline_mode<synchronous>, transform_indices = @transform_4, window_bounds = array<i64: 32, 128>}, {pipeline_mode = #tpu.pipeline_mode<synchronous>, transform_indices = @transform_5, window_bounds = array<i64: 1, 128>}, {pipeline_mode = #tpu.pipeline_mode<synchronous>, transform_indices = @transform_6, window_bounds = array<i64: 1, 128>}, {transform_indices = @transform_7, window_bounds = array<i64: 16, 128>}]} {
    %c0 = arith.constant 0 : index
    %c0_0 = arith.constant 0 : index
    %c0_1 = arith.constant 0 : index
    %0 = vector.load %arg1[%c0, %c0_0, %c0_1] : memref<8x16x32xbf16, #tpu.memory_space<vmem>>, vector<8x16x32xbf16>
    %1 = vector.shape_cast %0 : vector<8x16x32xbf16> to vector<128x32xbf16>
    %c0_2 = arith.constant 0 : index
    %c0_3 = arith.constant 0 : index
    %2 = vector.load %arg2[%c0_2, %c0_3] : memref<32x128xbf16, #tpu.memory_space<vmem>>, vector<32x128xbf16>
    %cst = arith.constant dense<0.000000e+00> : vector<128x128xf32>
    %3 = tpu.matmul %1, %2, %cst {dimension_numbers = #tpu.dot_dimension_numbers<[1], [0], [0], [1], [0, 0, 1, 1], [], []>} : vector<128x32xbf16>, vector<32x128xbf16>, vector<128x128xf32> -> vector<128x128xf32>
    %c0_4 = arith.constant 0 : index
    %c0_5 = arith.constant 0 : index
    %4 = vector.load %arg6[%c0_4, %c0_5] : memref<1x128xf32, #tpu.memory_space<vmem>>, vector<1x128xf32>
    %5 = vector.broadcast %4 : vector<1x128xf32> to vector<128x128xf32>
    %6 = arith.addf %3, %5 : vector<128x128xf32>
    %7 = vector.shape_cast %6 : vector<128x128xf32> to vector<8x16x128xf32>
    %c0_6 = arith.constant 0 : index
    %c0_7 = arith.constant 0 : index
    %c0_8 = arith.constant 0 : index
    %8 = vector.load %arg9[%c0_6, %c0_7, %c0_8] : memref<8x16x128xf32, #tpu.memory_space<vmem>>, vector<8x16x128xf32>
    tpu.vector_store %arg9[%c0_6, %c0_7, %c0_8], %7 {strides = array<i32>} : memref<8x16x128xf32, #tpu.memory_space<vmem>>, vector<8x16x128xf32>,
    %c0_9 = arith.constant 0 : index
    %c0_10 = arith.constant 0 : index
    %9 = vector.load %arg3[%c0_9, %c0_10] : memref<32x128xbf16, #tpu.memory_space<vmem>>, vector<32x128xbf16>
    %cst_11 = arith.constant dense<0.000000e+00> : vector<128x128xf32>
    %10 = tpu.matmul %1, %9, %cst_11 {dimension_numbers = #tpu.dot_dimension_numbers<[1], [0], [0], [1], [0, 0, 1, 1], [], []>} : vector<128x32xbf16>, vector<32x128xbf16>, vector<128x128xf32> -> vector<128x128xf32>
    %c0_12 = arith.constant 0 : index
    %c0_13 = arith.constant 0 : index
    %11 = vector.load %arg7[%c0_12, %c0_13] : memref<1x128xf32, #tpu.memory_space<vmem>>, vector<1x128xf32>
    %12 = vector.broadcast %11 : vector<1x128xf32> to vector<128x128xf32>
    %13 = arith.addf %10, %12 : vector<128x128xf32>
    %14 = vector.shape_cast %13 : vector<128x128xf32> to vector<8x16x128xf32>
    %c0_14 = arith.constant 0 : index
    %c0_15 = arith.constant 0 : index
    %c0_16 = arith.constant 0 : index
    %15 = vector.load %arg10[%c0_14, %c0_15, %c0_16] : memref<8x16x128xf32, #tpu.memory_space<vmem>>, vector<8x16x128xf32>
    tpu.vector_store %arg10[%c0_14, %c0_15, %c0_16], %14 {strides = array<i32>} : memref<8x16x128xf32, #tpu.memory_space<vmem>>, vector<8x16x128xf32>,
    %c0_17 = arith.constant 0 : index
    %c0_18 = arith.constant 0 : index
    %16 = vector.load %arg4[%c0_17, %c0_18] : memref<32x128xbf16, #tpu.memory_space<vmem>>, vector<32x128xbf16>
    %c0_19 = arith.constant 0 : index
    %c0_20 = arith.constant 0 : index
    %17 = vector.load %arg5[%c0_19, %c0_20] : memref<32x128xbf16, #tpu.memory_space<vmem>>, vector<32x128xbf16>
    %cst_21 = arith.constant 0.000000e+00 : f32
    %18 = vector.broadcast %cst_21 : f32 to vector<16x32xf32>
    %cst_22 = arith.constant 0.000000e+00 : f32
    %19 = vector.broadcast %cst_22 : f32 to vector<16x1xf32>
    %c0_i32 = arith.constant 0 : i32
    %20 = arith.index_cast %c0_i32 : i32 to index
    %c0_23 = arith.constant 0 : index
    %c0_24 = arith.constant 0 : index
    %21 = vector.load %arg9[%20, %c0_23, %c0_24] : memref<8x16x128xf32, #tpu.memory_space<vmem>>, vector<1x16x128xf32>
    %22 = vector.shape_cast %21 : vector<1x16x128xf32> to vector<16x128xf32>
    %23 = arith.truncf %18 : vector<16x32xf32> to vector<16x32xbf16>
    %cst_25 = arith.constant dense<0.000000e+00> : vector<16x128xf32>
    %24 = tpu.matmul %23, %16, %cst_25 {dimension_numbers = #tpu.dot_dimension_numbers<[1], [0], [0], [1], [0, 0, 1, 1], [], []>} : vector<16x32xbf16>, vector<32x128xbf16>, vector<16x128xf32> -> vector<16x128xf32>
    %25 = arith.addf %22, %24 : vector<16x128xf32>
    %26 = arith.negf %25 : vector<16x128xf32>
    %27 = math.exp %26 : vector<16x128xf32>
    %cst_26 = arith.constant 1.000000e+00 : f32
    %28 = vector.broadcast %cst_26 : f32 to vector<16x128xf32>
    %29 = arith.addf %28, %27 : vector<16x128xf32>
    %30 = arith.divf %28, %29 : vector<16x128xf32>
    %31 = vector.extract_strided_slice %30 {offsets = [0, 0], sizes = [16, 32], strides = [1, 1]} : vector<16x128xf32> to vector<16x32xf32>
    %32 = vector.extract_strided_slice %30 {offsets = [0, 32], sizes = [16, 32], strides = [1, 1]} : vector<16x128xf32> to vector<16x32xf32>
    %33 = vector.extract_strided_slice %30 {offsets = [0, 96], sizes = [16, 32], strides = [1, 1]} : vector<16x128xf32> to vector<16x32xf32>
    %34 = vector.extract_strided_slice %25 {offsets = [0, 64], sizes = [16, 32], strides = [1, 1]} : vector<16x128xf32> to vector<16x32xf32>
    %35 = math.tanh %34 : vector<16x32xf32>
    %36 = arith.mulf %32, %18 : vector<16x32xf32>
    %37 = arith.mulf %31, %35 : vector<16x32xf32>
    %38 = arith.addf %36, %37 : vector<16x32xf32>
    %39 = math.tanh %38 : vector<16x32xf32>
    %40 = arith.mulf %33, %39 : vector<16x32xf32>
    %c7_i32 = arith.constant 7 : i32
    %41 = arith.subi %c7_i32, %c0_i32 : i32
    %42 = arith.index_cast %41 : i32 to index
    %c0_27 = arith.constant 0 : index
    %c0_28 = arith.constant 0 : index
    %43 = vector.load %arg10[%42, %c0_27, %c0_28] : memref<8x16x128xf32, #tpu.memory_space<vmem>>, vector<1x16x128xf32>
    %44 = vector.shape_cast %43 : vector<1x16x128xf32> to vector<16x128xf32>
    %45 = arith.truncf %18 : vector<16x32xf32> to vector<16x32xbf16>
    %cst_29 = arith.constant dense<0.000000e+00> : vector<16x128xf32>
    %46 = tpu.matmul %45, %17, %cst_29 {dimension_numbers = #tpu.dot_dimension_numbers<[1], [0], [0], [1], [0, 0, 1, 1], [], []>} : vector<16x32xbf16>, vector<32x128xbf16>, vector<16x128xf32> -> vector<16x128xf32>
    %47 = arith.addf %44, %46 : vector<16x128xf32>
    %48 = arith.negf %47 : vector<16x128xf32>
    %49 = math.exp %48 : vector<16x128xf32>
    %cst_30 = arith.constant 1.000000e+00 : f32
    %50 = vector.broadcast %cst_30 : f32 to vector<16x128xf32>
    %51 = arith.addf %50, %49 : vector<16x128xf32>
    %52 = arith.divf %50, %51 : vector<16x128xf32>
    %53 = vector.extract_strided_slice %52 {offsets = [0, 0], sizes = [16, 32], strides = [1, 1]} : vector<16x128xf32> to vector<16x32xf32>
    %54 = vector.extract_strided_slice %52 {offsets = [0, 32], sizes = [16, 32], strides = [1, 1]} : vector<16x128xf32> to vector<16x32xf32>
    %55 = vector.extract_strided_slice %52 {offsets = [0, 96], sizes = [16, 32], strides = [1, 1]} : vector<16x128xf32> to vector<16x32xf32>
    %56 = vector.extract_strided_slice %47 {offsets = [0, 64], sizes = [16, 32], strides = [1, 1]} : vector<16x128xf32> to vector<16x32xf32>
    %57 = math.tanh %56 : vector<16x32xf32>
    %58 = arith.mulf %54, %18 : vector<16x32xf32>
    %59 = arith.mulf %53, %57 : vector<16x32xf32>
    %60 = arith.addf %58, %59 : vector<16x32xf32>
    %61 = math.tanh %60 : vector<16x32xf32>
    %62 = arith.mulf %55, %61 : vector<16x32xf32>
    %63 = arith.addf %40, %62 : vector<16x32xf32>
    %cst_31 = arith.constant dense<0.000000e+00> : vector<16xf32>
    %64 = vector.multi_reduction <add>, %63, %cst_31 [1] : vector<16x32xf32> to vector<16xf32>
    %65 = vector.shape_cast %64 : vector<16xf32> to vector<16x1xf32>
    %66 = arith.addf %19, %65 : vector<16x1xf32>
    %c1_i32 = arith.constant 1 : i32
    %67 = arith.index_cast %c1_i32 : i32 to index
    %c0_32 = arith.constant 0 : index
    %c0_33 = arith.constant 0 : index
    %68 = vector.load %arg9[%67, %c0_32, %c0_33] : memref<8x16x128xf32, #tpu.memory_space<vmem>>, vector<1x16x128xf32>
    %69 = vector.shape_cast %68 : vector<1x16x128xf32> to vector<16x128xf32>
    %70 = arith.truncf %40 : vector<16x32xf32> to vector<16x32xbf16>
    %cst_34 = arith.constant dense<0.000000e+00> : vector<16x128xf32>
    %71 = tpu.matmul %70, %16, %cst_34 {dimension_numbers = #tpu.dot_dimension_numbers<[1], [0], [0], [1], [0, 0, 1, 1], [], []>} : vector<16x32xbf16>, vector<32x128xbf16>, vector<16x128xf32> -> vector<16x128xf32>
    %72 = arith.addf %69, %71 : vector<16x128xf32>
    %73 = arith.negf %72 : vector<16x128xf32>
    %74 = math.exp %73 : vector<16x128xf32>
    %cst_35 = arith.constant 1.000000e+00 : f32
    %75 = vector.broadcast %cst_35 : f32 to vector<16x128xf32>
    %76 = arith.addf %75, %74 : vector<16x128xf32>
    %77 = arith.divf %75, %76 : vector<16x128xf32>
    %78 = vector.extract_strided_slice %77 {offsets = [0, 0], sizes = [16, 32], strides = [1, 1]} : vector<16x128xf32> to vector<16x32xf32>
    %79 = vector.extract_strided_slice %77 {offsets = [0, 32], sizes = [16, 32], strides = [1, 1]} : vector<16x128xf32> to vector<16x32xf32>
    %80 = vector.extract_strided_slice %77 {offsets = [0, 96], sizes = [16, 32], strides = [1, 1]} : vector<16x128xf32> to vector<16x32xf32>
    %81 = vector.extract_strided_slice %72 {offsets = [0, 64], sizes = [16, 32], strides = [1, 1]} : vector<16x128xf32> to vector<16x32xf32>
    %82 = math.tanh %81 : vector<16x32xf32>
    %83 = arith.mulf %79, %38 : vector<16x32xf32>
    %84 = arith.mulf %78, %82 : vector<16x32xf32>
    %85 = arith.addf %83, %84 : vector<16x32xf32>
    %86 = math.tanh %85 : vector<16x32xf32>
    %87 = arith.mulf %80, %86 : vector<16x32xf32>
    %c7_i32_36 = arith.constant 7 : i32
    %88 = arith.subi %c7_i32_36, %c1_i32 : i32
    %89 = arith.index_cast %88 : i32 to index
    %c0_37 = arith.constant 0 : index
    %c0_38 = arith.constant 0 : index
    %90 = vector.load %arg10[%89, %c0_37, %c0_38] : memref<8x16x128xf32, #tpu.memory_space<vmem>>, vector<1x16x128xf32>
    %91 = vector.shape_cast %90 : vector<1x16x128xf32> to vector<16x128xf32>
    %92 = arith.truncf %62 : vector<16x32xf32> to vector<16x32xbf16>
    %cst_39 = arith.constant dense<0.000000e+00> : vector<16x128xf32>
    %93 = tpu.matmul %92, %17, %cst_39 {dimension_numbers = #tpu.dot_dimension_numbers<[1], [0], [0], [1], [0, 0, 1, 1], [], []>} : vector<16x32xbf16>, vector<32x128xbf16>, vector<16x128xf32> -> vector<16x128xf32>
    %94 = arith.addf %91, %93 : vector<16x128xf32>
    %95 = arith.negf %94 : vector<16x128xf32>
    %96 = math.exp %95 : vector<16x128xf32>
    %cst_40 = arith.constant 1.000000e+00 : f32
    %97 = vector.broadcast %cst_40 : f32 to vector<16x128xf32>
    %98 = arith.addf %97, %96 : vector<16x128xf32>
    %99 = arith.divf %97, %98 : vector<16x128xf32>
    %100 = vector.extract_strided_slice %99 {offsets = [0, 0], sizes = [16, 32], strides = [1, 1]} : vector<16x128xf32> to vector<16x32xf32>
    %101 = vector.extract_strided_slice %99 {offsets = [0, 32], sizes = [16, 32], strides = [1, 1]} : vector<16x128xf32> to vector<16x32xf32>
    %102 = vector.extract_strided_slice %99 {offsets = [0, 96], sizes = [16, 32], strides = [1, 1]} : vector<16x128xf32> to vector<16x32xf32>
    %103 = vector.extract_strided_slice %94 {offsets = [0, 64], sizes = [16, 32], strides = [1, 1]} : vector<16x128xf32> to vector<16x32xf32>
    %104 = math.tanh %103 : vector<16x32xf32>
    %105 = arith.mulf %101, %60 : vector<16x32xf32>
    %106 = arith.mulf %100, %104 : vector<16x32xf32>
    %107 = arith.addf %105, %106 : vector<16x32xf32>
    %108 = math.tanh %107 : vector<16x32xf32>
    %109 = arith.mulf %102, %108 : vector<16x32xf32>
    %110 = arith.addf %87, %109 : vector<16x32xf32>
    %cst_41 = arith.constant dense<0.000000e+00> : vector<16xf32>
    %111 = vector.multi_reduction <add>, %110, %cst_41 [1] : vector<16x32xf32> to vector<16xf32>
    %112 = vector.shape_cast %111 : vector<16xf32> to vector<16x1xf32>
    %113 = arith.addf %66, %112 : vector<16x1xf32>
    %c2_i32 = arith.constant 2 : i32
    %114 = arith.index_cast %c2_i32 : i32 to index
    %c0_42 = arith.constant 0 : index
    %c0_43 = arith.constant 0 : index
    %115 = vector.load %arg9[%114, %c0_42, %c0_43] : memref<8x16x128xf32, #tpu.memory_space<vmem>>, vector<1x16x128xf32>
    %116 = vector.shape_cast %115 : vector<1x16x128xf32> to vector<16x128xf32>
    %117 = arith.truncf %87 : vector<16x32xf32> to vector<16x32xbf16>
    %cst_44 = arith.constant dense<0.000000e+00> : vector<16x128xf32>
    %118 = tpu.matmul %117, %16, %cst_44 {dimension_numbers = #tpu.dot_dimension_numbers<[1], [0], [0], [1], [0, 0, 1, 1], [], []>} : vector<16x32xbf16>, vector<32x128xbf16>, vector<16x128xf32> -> vector<16x128xf32>
    %119 = arith.addf %116, %118 : vector<16x128xf32>
    %120 = arith.negf %119 : vector<16x128xf32>
    %121 = math.exp %120 : vector<16x128xf32>
    %cst_45 = arith.constant 1.000000e+00 : f32
    %122 = vector.broadcast %cst_45 : f32 to vector<16x128xf32>
    %123 = arith.addf %122, %121 : vector<16x128xf32>
    %124 = arith.divf %122, %123 : vector<16x128xf32>
    %125 = vector.extract_strided_slice %124 {offsets = [0, 0], sizes = [16, 32], strides = [1, 1]} : vector<16x128xf32> to vector<16x32xf32>
    %126 = vector.extract_strided_slice %124 {offsets = [0, 32], sizes = [16, 32], strides = [1, 1]} : vector<16x128xf32> to vector<16x32xf32>
    %127 = vector.extract_strided_slice %124 {offsets = [0, 96], sizes = [16, 32], strides = [1, 1]} : vector<16x128xf32> to vector<16x32xf32>
    %128 = vector.extract_strided_slice %119 {offsets = [0, 64], sizes = [16, 32], strides = [1, 1]} : vector<16x128xf32> to vector<16x32xf32>
    %129 = math.tanh %128 : vector<16x32xf32>
    %130 = arith.mulf %126, %85 : vector<16x32xf32>
    %131 = arith.mulf %125, %129 : vector<16x32xf32>
    %132 = arith.addf %130, %131 : vector<16x32xf32>
    %133 = math.tanh %132 : vector<16x32xf32>
    %134 = arith.mulf %127, %133 : vector<16x32xf32>
    %c7_i32_46 = arith.constant 7 : i32
    %135 = arith.subi %c7_i32_46, %c2_i32 : i32
    %136 = arith.index_cast %135 : i32 to index
    %c0_47 = arith.constant 0 : index
    %c0_48 = arith.constant 0 : index
    %137 = vector.load %arg10[%136, %c0_47, %c0_48] : memref<8x16x128xf32, #tpu.memory_space<vmem>>, vector<1x16x128xf32>
    %138 = vector.shape_cast %137 : vector<1x16x128xf32> to vector<16x128xf32>
    %139 = arith.truncf %109 : vector<16x32xf32> to vector<16x32xbf16>
    %cst_49 = arith.constant dense<0.000000e+00> : vector<16x128xf32>
    %140 = tpu.matmul %139, %17, %cst_49 {dimension_numbers = #tpu.dot_dimension_numbers<[1], [0], [0], [1], [0, 0, 1, 1], [], []>} : vector<16x32xbf16>, vector<32x128xbf16>, vector<16x128xf32> -> vector<16x128xf32>
    %141 = arith.addf %138, %140 : vector<16x128xf32>
    %142 = arith.negf %141 : vector<16x128xf32>
    %143 = math.exp %142 : vector<16x128xf32>
    %cst_50 = arith.constant 1.000000e+00 : f32
    %144 = vector.broadcast %cst_50 : f32 to vector<16x128xf32>
    %145 = arith.addf %144, %143 : vector<16x128xf32>
    %146 = arith.divf %144, %145 : vector<16x128xf32>
    %147 = vector.extract_strided_slice %146 {offsets = [0, 0], sizes = [16, 32], strides = [1, 1]} : vector<16x128xf32> to vector<16x32xf32>
    %148 = vector.extract_strided_slice %146 {offsets = [0, 32], sizes = [16, 32], strides = [1, 1]} : vector<16x128xf32> to vector<16x32xf32>
    %149 = vector.extract_strided_slice %146 {offsets = [0, 96], sizes = [16, 32], strides = [1, 1]} : vector<16x128xf32> to vector<16x32xf32>
    %150 = vector.extract_strided_slice %141 {offsets = [0, 64], sizes = [16, 32], strides = [1, 1]} : vector<16x128xf32> to vector<16x32xf32>
    %151 = math.tanh %150 : vector<16x32xf32>
    %152 = arith.mulf %148, %107 : vector<16x32xf32>
    %153 = arith.mulf %147, %151 : vector<16x32xf32>
    %154 = arith.addf %152, %153 : vector<16x32xf32>
    %155 = math.tanh %154 : vector<16x32xf32>
    %156 = arith.mulf %149, %155 : vector<16x32xf32>
    %157 = arith.addf %134, %156 : vector<16x32xf32>
    %cst_51 = arith.constant dense<0.000000e+00> : vector<16xf32>
    %158 = vector.multi_reduction <add>, %157, %cst_51 [1] : vector<16x32xf32> to vector<16xf32>
    %159 = vector.shape_cast %158 : vector<16xf32> to vector<16x1xf32>
    %160 = arith.addf %113, %159 : vector<16x1xf32>
    %c3_i32 = arith.constant 3 : i32
    %161 = arith.index_cast %c3_i32 : i32 to index
    %c0_52 = arith.constant 0 : index
    %c0_53 = arith.constant 0 : index
    %162 = vector.load %arg9[%161, %c0_52, %c0_53] : memref<8x16x128xf32, #tpu.memory_space<vmem>>, vector<1x16x128xf32>
    %163 = vector.shape_cast %162 : vector<1x16x128xf32> to vector<16x128xf32>
    %164 = arith.truncf %134 : vector<16x32xf32> to vector<16x32xbf16>
    %cst_54 = arith.constant dense<0.000000e+00> : vector<16x128xf32>
    %165 = tpu.matmul %164, %16, %cst_54 {dimension_numbers = #tpu.dot_dimension_numbers<[1], [0], [0], [1], [0, 0, 1, 1], [], []>} : vector<16x32xbf16>, vector<32x128xbf16>, vector<16x128xf32> -> vector<16x128xf32>
    %166 = arith.addf %163, %165 : vector<16x128xf32>
    %167 = arith.negf %166 : vector<16x128xf32>
    %168 = math.exp %167 : vector<16x128xf32>
    %cst_55 = arith.constant 1.000000e+00 : f32
    %169 = vector.broadcast %cst_55 : f32 to vector<16x128xf32>
    %170 = arith.addf %169, %168 : vector<16x128xf32>
    %171 = arith.divf %169, %170 : vector<16x128xf32>
    %172 = vector.extract_strided_slice %171 {offsets = [0, 0], sizes = [16, 32], strides = [1, 1]} : vector<16x128xf32> to vector<16x32xf32>
    %173 = vector.extract_strided_slice %171 {offsets = [0, 32], sizes = [16, 32], strides = [1, 1]} : vector<16x128xf32> to vector<16x32xf32>
    %174 = vector.extract_strided_slice %171 {offsets = [0, 96], sizes = [16, 32], strides = [1, 1]} : vector<16x128xf32> to vector<16x32xf32>
    %175 = vector.extract_strided_slice %166 {offsets = [0, 64], sizes = [16, 32], strides = [1, 1]} : vector<16x128xf32> to vector<16x32xf32>
    %176 = math.tanh %175 : vector<16x32xf32>
    %177 = arith.mulf %173, %132 : vector<16x32xf32>
    %178 = arith.mulf %172, %176 : vector<16x32xf32>
    %179 = arith.addf %177, %178 : vector<16x32xf32>
    %180 = math.tanh %179 : vector<16x32xf32>
    %181 = arith.mulf %174, %180 : vector<16x32xf32>
    %c7_i32_56 = arith.constant 7 : i32
    %182 = arith.subi %c7_i32_56, %c3_i32 : i32
    %183 = arith.index_cast %182 : i32 to index
    %c0_57 = arith.constant 0 : index
    %c0_58 = arith.constant 0 : index
    %184 = vector.load %arg10[%183, %c0_57, %c0_58] : memref<8x16x128xf32, #tpu.memory_space<vmem>>, vector<1x16x128xf32>
    %185 = vector.shape_cast %184 : vector<1x16x128xf32> to vector<16x128xf32>
    %186 = arith.truncf %156 : vector<16x32xf32> to vector<16x32xbf16>
    %cst_59 = arith.constant dense<0.000000e+00> : vector<16x128xf32>
    %187 = tpu.matmul %186, %17, %cst_59 {dimension_numbers = #tpu.dot_dimension_numbers<[1], [0], [0], [1], [0, 0, 1, 1], [], []>} : vector<16x32xbf16>, vector<32x128xbf16>, vector<16x128xf32> -> vector<16x128xf32>
    %188 = arith.addf %185, %187 : vector<16x128xf32>
    %189 = arith.negf %188 : vector<16x128xf32>
    %190 = math.exp %189 : vector<16x128xf32>
    %cst_60 = arith.constant 1.000000e+00 : f32
    %191 = vector.broadcast %cst_60 : f32 to vector<16x128xf32>
    %192 = arith.addf %191, %190 : vector<16x128xf32>
    %193 = arith.divf %191, %192 : vector<16x128xf32>
    %194 = vector.extract_strided_slice %193 {offsets = [0, 0], sizes = [16, 32], strides = [1, 1]} : vector<16x128xf32> to vector<16x32xf32>
    %195 = vector.extract_strided_slice %193 {offsets = [0, 32], sizes = [16, 32], strides = [1, 1]} : vector<16x128xf32> to vector<16x32xf32>
    %196 = vector.extract_strided_slice %193 {offsets = [0, 96], sizes = [16, 32], strides = [1, 1]} : vector<16x128xf32> to vector<16x32xf32>
    %197 = vector.extract_strided_slice %188 {offsets = [0, 64], sizes = [16, 32], strides = [1, 1]} : vector<16x128xf32> to vector<16x32xf32>
    %198 = math.tanh %197 : vector<16x32xf32>
    %199 = arith.mulf %195, %154 : vector<16x32xf32>
    %200 = arith.mulf %194, %198 : vector<16x32xf32>
    %201 = arith.addf %199, %200 : vector<16x32xf32>
    %202 = math.tanh %201 : vector<16x32xf32>
    %203 = arith.mulf %196, %202 : vector<16x32xf32>
    %204 = arith.addf %181, %203 : vector<16x32xf32>
    %cst_61 = arith.constant dense<0.000000e+00> : vector<16xf32>
    %205 = vector.multi_reduction <add>, %204, %cst_61 [1] : vector<16x32xf32> to vector<16xf32>
    %206 = vector.shape_cast %205 : vector<16xf32> to vector<16x1xf32>
    %207 = arith.addf %160, %206 : vector<16x1xf32>
    %c4_i32 = arith.constant 4 : i32
    %208 = arith.index_cast %c4_i32 : i32 to index
    %c0_62 = arith.constant 0 : index
    %c0_63 = arith.constant 0 : index
    %209 = vector.load %arg9[%208, %c0_62, %c0_63] : memref<8x16x128xf32, #tpu.memory_space<vmem>>, vector<1x16x128xf32>
    %210 = vector.shape_cast %209 : vector<1x16x128xf32> to vector<16x128xf32>
    %211 = arith.truncf %181 : vector<16x32xf32> to vector<16x32xbf16>
    %cst_64 = arith.constant dense<0.000000e+00> : vector<16x128xf32>
    %212 = tpu.matmul %211, %16, %cst_64 {dimension_numbers = #tpu.dot_dimension_numbers<[1], [0], [0], [1], [0, 0, 1, 1], [], []>} : vector<16x32xbf16>, vector<32x128xbf16>, vector<16x128xf32> -> vector<16x128xf32>
    %213 = arith.addf %210, %212 : vector<16x128xf32>
    %214 = arith.negf %213 : vector<16x128xf32>
    %215 = math.exp %214 : vector<16x128xf32>
    %cst_65 = arith.constant 1.000000e+00 : f32
    %216 = vector.broadcast %cst_65 : f32 to vector<16x128xf32>
    %217 = arith.addf %216, %215 : vector<16x128xf32>
    %218 = arith.divf %216, %217 : vector<16x128xf32>
    %219 = vector.extract_strided_slice %218 {offsets = [0, 0], sizes = [16, 32], strides = [1, 1]} : vector<16x128xf32> to vector<16x32xf32>
    %220 = vector.extract_strided_slice %218 {offsets = [0, 32], sizes = [16, 32], strides = [1, 1]} : vector<16x128xf32> to vector<16x32xf32>
    %221 = vector.extract_strided_slice %218 {offsets = [0, 96], sizes = [16, 32], strides = [1, 1]} : vector<16x128xf32> to vector<16x32xf32>
    %222 = vector.extract_strided_slice %213 {offsets = [0, 64], sizes = [16, 32], strides = [1, 1]} : vector<16x128xf32> to vector<16x32xf32>
    %223 = math.tanh %222 : vector<16x32xf32>
    %224 = arith.mulf %220, %179 : vector<16x32xf32>
    %225 = arith.mulf %219, %223 : vector<16x32xf32>
    %226 = arith.addf %224, %225 : vector<16x32xf32>
    %227 = math.tanh %226 : vector<16x32xf32>
    %228 = arith.mulf %221, %227 : vector<16x32xf32>
    %c7_i32_66 = arith.constant 7 : i32
    %229 = arith.subi %c7_i32_66, %c4_i32 : i32
    %230 = arith.index_cast %229 : i32 to index
    %c0_67 = arith.constant 0 : index
    %c0_68 = arith.constant 0 : index
    %231 = vector.load %arg10[%230, %c0_67, %c0_68] : memref<8x16x128xf32, #tpu.memory_space<vmem>>, vector<1x16x128xf32>
    %232 = vector.shape_cast %231 : vector<1x16x128xf32> to vector<16x128xf32>
    %233 = arith.truncf %203 : vector<16x32xf32> to vector<16x32xbf16>
    %cst_69 = arith.constant dense<0.000000e+00> : vector<16x128xf32>
    %234 = tpu.matmul %233, %17, %cst_69 {dimension_numbers = #tpu.dot_dimension_numbers<[1], [0], [0], [1], [0, 0, 1, 1], [], []>} : vector<16x32xbf16>, vector<32x128xbf16>, vector<16x128xf32> -> vector<16x128xf32>
    %235 = arith.addf %232, %234 : vector<16x128xf32>
    %236 = arith.negf %235 : vector<16x128xf32>
    %237 = math.exp %236 : vector<16x128xf32>
    %cst_70 = arith.constant 1.000000e+00 : f32
    %238 = vector.broadcast %cst_70 : f32 to vector<16x128xf32>
    %239 = arith.addf %238, %237 : vector<16x128xf32>
    %240 = arith.divf %238, %239 : vector<16x128xf32>
    %241 = vector.extract_strided_slice %240 {offsets = [0, 0], sizes = [16, 32], strides = [1, 1]} : vector<16x128xf32> to vector<16x32xf32>
    %242 = vector.extract_strided_slice %240 {offsets = [0, 32], sizes = [16, 32], strides = [1, 1]} : vector<16x128xf32> to vector<16x32xf32>
    %243 = vector.extract_strided_slice %240 {offsets = [0, 96], sizes = [16, 32], strides = [1, 1]} : vector<16x128xf32> to vector<16x32xf32>
    %244 = vector.extract_strided_slice %235 {offsets = [0, 64], sizes = [16, 32], strides = [1, 1]} : vector<16x128xf32> to vector<16x32xf32>
    %245 = math.tanh %244 : vector<16x32xf32>
    %246 = arith.mulf %242, %201 : vector<16x32xf32>
    %247 = arith.mulf %241, %245 : vector<16x32xf32>
    %248 = arith.addf %246, %247 : vector<16x32xf32>
    %249 = math.tanh %248 : vector<16x32xf32>
    %250 = arith.mulf %243, %249 : vector<16x32xf32>
    %251 = arith.addf %228, %250 : vector<16x32xf32>
    %cst_71 = arith.constant dense<0.000000e+00> : vector<16xf32>
    %252 = vector.multi_reduction <add>, %251, %cst_71 [1] : vector<16x32xf32> to vector<16xf32>
    %253 = vector.shape_cast %252 : vector<16xf32> to vector<16x1xf32>
    %254 = arith.addf %207, %253 : vector<16x1xf32>
    %c5_i32 = arith.constant 5 : i32
    %255 = arith.index_cast %c5_i32 : i32 to index
    %c0_72 = arith.constant 0 : index
    %c0_73 = arith.constant 0 : index
    %256 = vector.load %arg9[%255, %c0_72, %c0_73] : memref<8x16x128xf32, #tpu.memory_space<vmem>>, vector<1x16x128xf32>
    %257 = vector.shape_cast %256 : vector<1x16x128xf32> to vector<16x128xf32>
    %258 = arith.truncf %228 : vector<16x32xf32> to vector<16x32xbf16>
    %cst_74 = arith.constant dense<0.000000e+00> : vector<16x128xf32>
    %259 = tpu.matmul %258, %16, %cst_74 {dimension_numbers = #tpu.dot_dimension_numbers<[1], [0], [0], [1], [0, 0, 1, 1], [], []>} : vector<16x32xbf16>, vector<32x128xbf16>, vector<16x128xf32> -> vector<16x128xf32>
    %260 = arith.addf %257, %259 : vector<16x128xf32>
    %261 = arith.negf %260 : vector<16x128xf32>
    %262 = math.exp %261 : vector<16x128xf32>
    %cst_75 = arith.constant 1.000000e+00 : f32
    %263 = vector.broadcast %cst_75 : f32 to vector<16x128xf32>
    %264 = arith.addf %263, %262 : vector<16x128xf32>
    %265 = arith.divf %263, %264 : vector<16x128xf32>
    %266 = vector.extract_strided_slice %265 {offsets = [0, 0], sizes = [16, 32], strides = [1, 1]} : vector<16x128xf32> to vector<16x32xf32>
    %267 = vector.extract_strided_slice %265 {offsets = [0, 32], sizes = [16, 32], strides = [1, 1]} : vector<16x128xf32> to vector<16x32xf32>
    %268 = vector.extract_strided_slice %265 {offsets = [0, 96], sizes = [16, 32], strides = [1, 1]} : vector<16x128xf32> to vector<16x32xf32>
    %269 = vector.extract_strided_slice %260 {offsets = [0, 64], sizes = [16, 32], strides = [1, 1]} : vector<16x128xf32> to vector<16x32xf32>
    %270 = math.tanh %269 : vector<16x32xf32>
    %271 = arith.mulf %267, %226 : vector<16x32xf32>
    %272 = arith.mulf %266, %270 : vector<16x32xf32>
    %273 = arith.addf %271, %272 : vector<16x32xf32>
    %274 = math.tanh %273 : vector<16x32xf32>
    %275 = arith.mulf %268, %274 : vector<16x32xf32>
    %c7_i32_76 = arith.constant 7 : i32
    %276 = arith.subi %c7_i32_76, %c5_i32 : i32
    %277 = arith.index_cast %276 : i32 to index
    %c0_77 = arith.constant 0 : index
    %c0_78 = arith.constant 0 : index
    %278 = vector.load %arg10[%277, %c0_77, %c0_78] : memref<8x16x128xf32, #tpu.memory_space<vmem>>, vector<1x16x128xf32>
    %279 = vector.shape_cast %278 : vector<1x16x128xf32> to vector<16x128xf32>
    %280 = arith.truncf %250 : vector<16x32xf32> to vector<16x32xbf16>
    %cst_79 = arith.constant dense<0.000000e+00> : vector<16x128xf32>
    %281 = tpu.matmul %280, %17, %cst_79 {dimension_numbers = #tpu.dot_dimension_numbers<[1], [0], [0], [1], [0, 0, 1, 1], [], []>} : vector<16x32xbf16>, vector<32x128xbf16>, vector<16x128xf32> -> vector<16x128xf32>
    %282 = arith.addf %279, %281 : vector<16x128xf32>
    %283 = arith.negf %282 : vector<16x128xf32>
    %284 = math.exp %283 : vector<16x128xf32>
    %cst_80 = arith.constant 1.000000e+00 : f32
    %285 = vector.broadcast %cst_80 : f32 to vector<16x128xf32>
    %286 = arith.addf %285, %284 : vector<16x128xf32>
    %287 = arith.divf %285, %286 : vector<16x128xf32>
    %288 = vector.extract_strided_slice %287 {offsets = [0, 0], sizes = [16, 32], strides = [1, 1]} : vector<16x128xf32> to vector<16x32xf32>
    %289 = vector.extract_strided_slice %287 {offsets = [0, 32], sizes = [16, 32], strides = [1, 1]} : vector<16x128xf32> to vector<16x32xf32>
    %290 = vector.extract_strided_slice %287 {offsets = [0, 96], sizes = [16, 32], strides = [1, 1]} : vector<16x128xf32> to vector<16x32xf32>
    %291 = vector.extract_strided_slice %282 {offsets = [0, 64], sizes = [16, 32], strides = [1, 1]} : vector<16x128xf32> to vector<16x32xf32>
    %292 = math.tanh %291 : vector<16x32xf32>
    %293 = arith.mulf %289, %248 : vector<16x32xf32>
    %294 = arith.mulf %288, %292 : vector<16x32xf32>
    %295 = arith.addf %293, %294 : vector<16x32xf32>
    %296 = math.tanh %295 : vector<16x32xf32>
    %297 = arith.mulf %290, %296 : vector<16x32xf32>
    %298 = arith.addf %275, %297 : vector<16x32xf32>
    %cst_81 = arith.constant dense<0.000000e+00> : vector<16xf32>
    %299 = vector.multi_reduction <add>, %298, %cst_81 [1] : vector<16x32xf32> to vector<16xf32>
    %300 = vector.shape_cast %299 : vector<16xf32> to vector<16x1xf32>
    %301 = arith.addf %254, %300 : vector<16x1xf32>
    %c6_i32 = arith.constant 6 : i32
    %302 = arith.index_cast %c6_i32 : i32 to index
    %c0_82 = arith.constant 0 : index
    %c0_83 = arith.constant 0 : index
    %303 = vector.load %arg9[%302, %c0_82, %c0_83] : memref<8x16x128xf32, #tpu.memory_space<vmem>>, vector<1x16x128xf32>
    %304 = vector.shape_cast %303 : vector<1x16x128xf32> to vector<16x128xf32>
    %305 = arith.truncf %275 : vector<16x32xf32> to vector<16x32xbf16>
    %cst_84 = arith.constant dense<0.000000e+00> : vector<16x128xf32>
    %306 = tpu.matmul %305, %16, %cst_84 {dimension_numbers = #tpu.dot_dimension_numbers<[1], [0], [0], [1], [0, 0, 1, 1], [], []>} : vector<16x32xbf16>, vector<32x128xbf16>, vector<16x128xf32> -> vector<16x128xf32>
    %307 = arith.addf %304, %306 : vector<16x128xf32>
    %308 = arith.negf %307 : vector<16x128xf32>
    %309 = math.exp %308 : vector<16x128xf32>
    %cst_85 = arith.constant 1.000000e+00 : f32
    %310 = vector.broadcast %cst_85 : f32 to vector<16x128xf32>
    %311 = arith.addf %310, %309 : vector<16x128xf32>
    %312 = arith.divf %310, %311 : vector<16x128xf32>
    %313 = vector.extract_strided_slice %312 {offsets = [0, 0], sizes = [16, 32], strides = [1, 1]} : vector<16x128xf32> to vector<16x32xf32>
    %314 = vector.extract_strided_slice %312 {offsets = [0, 32], sizes = [16, 32], strides = [1, 1]} : vector<16x128xf32> to vector<16x32xf32>
    %315 = vector.extract_strided_slice %312 {offsets = [0, 96], sizes = [16, 32], strides = [1, 1]} : vector<16x128xf32> to vector<16x32xf32>
    %316 = vector.extract_strided_slice %307 {offsets = [0, 64], sizes = [16, 32], strides = [1, 1]} : vector<16x128xf32> to vector<16x32xf32>
    %317 = math.tanh %316 : vector<16x32xf32>
    %318 = arith.mulf %314, %273 : vector<16x32xf32>
    %319 = arith.mulf %313, %317 : vector<16x32xf32>
    %320 = arith.addf %318, %319 : vector<16x32xf32>
    %321 = math.tanh %320 : vector<16x32xf32>
    %322 = arith.mulf %315, %321 : vector<16x32xf32>
    %c7_i32_86 = arith.constant 7 : i32
    %323 = arith.subi %c7_i32_86, %c6_i32 : i32
    %324 = arith.index_cast %323 : i32 to index
    %c0_87 = arith.constant 0 : index
    %c0_88 = arith.constant 0 : index
    %325 = vector.load %arg10[%324, %c0_87, %c0_88] : memref<8x16x128xf32, #tpu.memory_space<vmem>>, vector<1x16x128xf32>
    %326 = vector.shape_cast %325 : vector<1x16x128xf32> to vector<16x128xf32>
    %327 = arith.truncf %297 : vector<16x32xf32> to vector<16x32xbf16>
    %cst_89 = arith.constant dense<0.000000e+00> : vector<16x128xf32>
    %328 = tpu.matmul %327, %17, %cst_89 {dimension_numbers = #tpu.dot_dimension_numbers<[1], [0], [0], [1], [0, 0, 1, 1], [], []>} : vector<16x32xbf16>, vector<32x128xbf16>, vector<16x128xf32> -> vector<16x128xf32>
    %329 = arith.addf %326, %328 : vector<16x128xf32>
    %330 = arith.negf %329 : vector<16x128xf32>
    %331 = math.exp %330 : vector<16x128xf32>
    %cst_90 = arith.constant 1.000000e+00 : f32
    %332 = vector.broadcast %cst_90 : f32 to vector<16x128xf32>
    %333 = arith.addf %332, %331 : vector<16x128xf32>
    %334 = arith.divf %332, %333 : vector<16x128xf32>
    %335 = vector.extract_strided_slice %334 {offsets = [0, 0], sizes = [16, 32], strides = [1, 1]} : vector<16x128xf32> to vector<16x32xf32>
    %336 = vector.extract_strided_slice %334 {offsets = [0, 32], sizes = [16, 32], strides = [1, 1]} : vector<16x128xf32> to vector<16x32xf32>
    %337 = vector.extract_strided_slice %334 {offsets = [0, 96], sizes = [16, 32], strides = [1, 1]} : vector<16x128xf32> to vector<16x32xf32>
    %338 = vector.extract_strided_slice %329 {offsets = [0, 64], sizes = [16, 32], strides = [1, 1]} : vector<16x128xf32> to vector<16x32xf32>
    %339 = math.tanh %338 : vector<16x32xf32>
    %340 = arith.mulf %336, %295 : vector<16x32xf32>
    %341 = arith.mulf %335, %339 : vector<16x32xf32>
    %342 = arith.addf %340, %341 : vector<16x32xf32>
    %343 = math.tanh %342 : vector<16x32xf32>
    %344 = arith.mulf %337, %343 : vector<16x32xf32>
    %345 = arith.addf %322, %344 : vector<16x32xf32>
    %cst_91 = arith.constant dense<0.000000e+00> : vector<16xf32>
    %346 = vector.multi_reduction <add>, %345, %cst_91 [1] : vector<16x32xf32> to vector<16xf32>
    %347 = vector.shape_cast %346 : vector<16xf32> to vector<16x1xf32>
    %348 = arith.addf %301, %347 : vector<16x1xf32>
    %c7_i32_92 = arith.constant 7 : i32
    %349 = arith.index_cast %c7_i32_92 : i32 to index
    %c0_93 = arith.constant 0 : index
    %c0_94 = arith.constant 0 : index
    %350 = vector.load %arg9[%349, %c0_93, %c0_94] : memref<8x16x128xf32, #tpu.memory_space<vmem>>, vector<1x16x128xf32>
    %351 = vector.shape_cast %350 : vector<1x16x128xf32> to vector<16x128xf32>
    %352 = arith.truncf %322 : vector<16x32xf32> to vector<16x32xbf16>
    %cst_95 = arith.constant dense<0.000000e+00> : vector<16x128xf32>
    %353 = tpu.matmul %352, %16, %cst_95 {dimension_numbers = #tpu.dot_dimension_numbers<[1], [0], [0], [1], [0, 0, 1, 1], [], []>} : vector<16x32xbf16>, vector<32x128xbf16>, vector<16x128xf32> -> vector<16x128xf32>
    %354 = arith.addf %351, %353 : vector<16x128xf32>
    %355 = arith.negf %354 : vector<16x128xf32>
    %356 = math.exp %355 : vector<16x128xf32>
    %cst_96 = arith.constant 1.000000e+00 : f32
    %357 = vector.broadcast %cst_96 : f32 to vector<16x128xf32>
    %358 = arith.addf %357, %356 : vector<16x128xf32>
    %359 = arith.divf %357, %358 : vector<16x128xf32>
    %360 = vector.extract_strided_slice %359 {offsets = [0, 0], sizes = [16, 32], strides = [1, 1]} : vector<16x128xf32> to vector<16x32xf32>
    %361 = vector.extract_strided_slice %359 {offsets = [0, 32], sizes = [16, 32], strides = [1, 1]} : vector<16x128xf32> to vector<16x32xf32>
    %362 = vector.extract_strided_slice %359 {offsets = [0, 96], sizes = [16, 32], strides = [1, 1]} : vector<16x128xf32> to vector<16x32xf32>
    %363 = vector.extract_strided_slice %354 {offsets = [0, 64], sizes = [16, 32], strides = [1, 1]} : vector<16x128xf32> to vector<16x32xf32>
    %364 = math.tanh %363 : vector<16x32xf32>
    %365 = arith.mulf %361, %320 : vector<16x32xf32>
    %366 = arith.mulf %360, %364 : vector<16x32xf32>
    %367 = arith.addf %365, %366 : vector<16x32xf32>
    %368 = math.tanh %367 : vector<16x32xf32>
    %369 = arith.mulf %362, %368 : vector<16x32xf32>
    %c7_i32_97 = arith.constant 7 : i32
    %370 = arith.subi %c7_i32_97, %c7_i32_92 : i32
    %371 = arith.index_cast %370 : i32 to index
    %c0_98 = arith.constant 0 : index
    %c0_99 = arith.constant 0 : index
    %372 = vector.load %arg10[%371, %c0_98, %c0_99] : memref<8x16x128xf32, #tpu.memory_space<vmem>>, vector<1x16x128xf32>
    %373 = vector.shape_cast %372 : vector<1x16x128xf32> to vector<16x128xf32>
    %374 = arith.truncf %344 : vector<16x32xf32> to vector<16x32xbf16>
    %cst_100 = arith.constant dense<0.000000e+00> : vector<16x128xf32>
    %375 = tpu.matmul %374, %17, %cst_100 {dimension_numbers = #tpu.dot_dimension_numbers<[1], [0], [0], [1], [0, 0, 1, 1], [], []>} : vector<16x32xbf16>, vector<32x128xbf16>, vector<16x128xf32> -> vector<16x128xf32>
    %376 = arith.addf %373, %375 : vector<16x128xf32>
    %377 = arith.negf %376 : vector<16x128xf32>
    %378 = math.exp %377 : vector<16x128xf32>
    %cst_101 = arith.constant 1.000000e+00 : f32
    %379 = vector.broadcast %cst_101 : f32 to vector<16x128xf32>
    %380 = arith.addf %379, %378 : vector<16x128xf32>
    %381 = arith.divf %379, %380 : vector<16x128xf32>
    %382 = vector.extract_strided_slice %381 {offsets = [0, 0], sizes = [16, 32], strides = [1, 1]} : vector<16x128xf32> to vector<16x32xf32>
    %383 = vector.extract_strided_slice %381 {offsets = [0, 32], sizes = [16, 32], strides = [1, 1]} : vector<16x128xf32> to vector<16x32xf32>
    %384 = vector.extract_strided_slice %381 {offsets = [0, 96], sizes = [16, 32], strides = [1, 1]} : vector<16x128xf32> to vector<16x32xf32>
    %385 = vector.extract_strided_slice %376 {offsets = [0, 64], sizes = [16, 32], strides = [1, 1]} : vector<16x128xf32> to vector<16x32xf32>
    %386 = math.tanh %385 : vector<16x32xf32>
    %387 = arith.mulf %383, %342 : vector<16x32xf32>
    %388 = arith.mulf %382, %386 : vector<16x32xf32>
    %389 = arith.addf %387, %388 : vector<16x32xf32>
    %390 = math.tanh %389 : vector<16x32xf32>
    %391 = arith.mulf %384, %390 : vector<16x32xf32>
    %392 = arith.addf %369, %391 : vector<16x32xf32>
    %cst_102 = arith.constant dense<0.000000e+00> : vector<16xf32>
    %393 = vector.multi_reduction <add>, %392, %cst_102 [1] : vector<16x32xf32> to vector<16xf32>
    %394 = vector.shape_cast %393 : vector<16xf32> to vector<16x1xf32>
    %395 = arith.addf %348, %394 : vector<16x1xf32>
    %c8_i32 = arith.constant 8 : i32
    %cst_103 = arith.constant 1.562500e-02 : f32
    %396 = vector.broadcast %cst_103 : f32 to vector<16x1xf32>
    %397 = arith.mulf %395, %396 : vector<16x1xf32>
    %398 = vector.shape_cast %397 : vector<16x1xf32> to vector<16x1xf32>
    %399 = vector.broadcast %398 : vector<16x1xf32> to vector<16x128xf32>
    %c0_104 = arith.constant 0 : index
    %c0_105 = arith.constant 0 : index
    %400 = vector.load %arg8[%c0_104, %c0_105] : memref<16x128xf32, #tpu.memory_space<vmem>>, vector<16x128xf32>
    tpu.vector_store %arg8[%c0_104, %c0_105], %399 {strides = array<i32>} : memref<16x128xf32, #tpu.memory_space<vmem>>, vector<16x128xf32>,
    return
  }
  func.func @transform_0(%arg0: i32) -> (i32, i32, i32) {
    %c0_i32 = arith.constant 0 : i32
    %c0_i32_0 = arith.constant 0 : i32
    %c0_i32_1 = arith.constant 0 : i32
    return %c0_i32, %arg0, %c0_i32_0 : i32, i32, i32
  }
  func.func @transform_1(%arg0: i32) -> (i32, i32) {
    %c0_i32 = arith.constant 0 : i32
    %c0_i32_0 = arith.constant 0 : i32
    %c0_i32_1 = arith.constant 0 : i32
    return %c0_i32, %c0_i32_0 : i32, i32
  }
  func.func @transform_2(%arg0: i32) -> (i32, i32) {
    %c0_i32 = arith.constant 0 : i32
    %c0_i32_0 = arith.constant 0 : i32
    %c0_i32_1 = arith.constant 0 : i32
    return %c0_i32, %c0_i32_0 : i32, i32
  }
  func.func @transform_3(%arg0: i32) -> (i32, i32) {
    %c0_i32 = arith.constant 0 : i32
    %c0_i32_0 = arith.constant 0 : i32
    %c0_i32_1 = arith.constant 0 : i32
    return %c0_i32, %c0_i32_0 : i32, i32
  }
  func.func @transform_4(%arg0: i32) -> (i32, i32) {
    %c0_i32 = arith.constant 0 : i32
    %c0_i32_0 = arith.constant 0 : i32
    %c0_i32_1 = arith.constant 0 : i32
    return %c0_i32, %c0_i32_0 : i32, i32
  }
  func.func @transform_5(%arg0: i32) -> (i32, i32) {
    %c0_i32 = arith.constant 0 : i32
    %c0_i32_0 = arith.constant 0 : i32
    %c0_i32_1 = arith.constant 0 : i32
    return %c0_i32, %c0_i32_0 : i32, i32
  }
  func.func @transform_6(%arg0: i32) -> (i32, i32) {
    %c0_i32 = arith.constant 0 : i32
    %c0_i32_0 = arith.constant 0 : i32
    %c0_i32_1 = arith.constant 0 : i32
    return %c0_i32, %c0_i32_0 : i32, i32
  }
  func.func @transform_7(%arg0: i32) -> (i32, i32) {
    %c0_i32 = arith.constant 0 : i32
    %c0_i32_0 = arith.constant 0 : i32
    return %arg0, %c0_i32 : i32, i32
  }
}

</mosaic_0001>

<llo_original>
// kernel: tpu_custom_call.1
$region0: #{tpu_custom_call.1}
  #allocation0 [shape = 'u32[]', space=smem, size = 0x4, offset = 0x4, fixed_abs, tag = 'smem constant byte address 0x4 - core index']
  #allocation1 [shape = 'u32[144,128]{1,0:T(1,128)}', space=vmem, size = 0x12000, scoped, tag = 'internal scratch']
  #allocation2 [shape = 'f32[8,16,128]{2,1,0:T(8,128)}', space=vmem, size = 0x10000, scoped, tag = 'scratch operand']
  #allocation3 [shape = 'f32[8,16,128]{2,1,0:T(8,128)}', space=vmem, size = 0x10000, scoped, tag = 'scratch operand']
  %s0 = inlined_call_operand.hbm [shape: bf16[8,16,32], index: 0, kind: input, shape index: {}]
  %s1 = inlined_call_operand.hbm [shape: bf16[32,128], index: 1, kind: input, shape index: {}]
  %s2 = inlined_call_operand.hbm [shape: bf16[32,128], index: 2, kind: input, shape index: {}]
  %s3 = inlined_call_operand.hbm [shape: bf16[32,128], index: 3, kind: input, shape index: {}]
  %s4 = inlined_call_operand.hbm [shape: bf16[32,128], index: 4, kind: input, shape index: {}]
  %s5 = inlined_call_operand.vmem [shape: f32[1,128], index: 5, kind: input, shape index: {}]
  %s6 = inlined_call_operand.vmem [shape: f32[1,128], index: 6, kind: input, shape index: {}]
  %s7 = inlined_call_operand.hbm [shape: f32[16,128], index: 7, kind: output, shape index: {}]
  %s8 = sld [smem:[#allocation0]]
  $region58: #{tpu_custom_call.1} parent=0
    _
  %s10 = ssub.s32 1, %s8
  %s11 = scalar_select 0, %s10, %s8
  $region1: #{tpu_custom_call.1} parent=0
    #allocation4 [shape = 'u8[32768]{0}', space=vmem, size = 0x8000, scoped, tag = 'input window, operand 0, single buffered']
    #allocation5 [shape = 's32[1]{0}', space=sflag, size = 0x4, scoped, tag = 'scoped memory for tpu_custom_call.1']
    #allocation6 [shape = 's32[1]{0}', space=sflag, size = 0x4, scoped, tag = 'scoped memory for tpu_custom_call.1']
    #allocation7 [shape = 'u8[8192]{0}', space=vmem, size = 0x2000, scoped, tag = 'input window, operand 1, single buffered']
    #allocation8 [shape = 's32[1]{0}', space=sflag, size = 0x4, scoped, tag = 'scoped memory for tpu_custom_call.1']
    #allocation9 [shape = 'u8[8192]{0}', space=vmem, size = 0x2000, scoped, tag = 'input window, operand 2, single buffered']
    #allocation10 [shape = 'u8[8192]{0}', space=vmem, size = 0x2000, scoped, tag = 'input window, operand 3, single buffered']
    #allocation11 [shape = 's32[1]{0}', space=sflag, size = 0x4, scoped, tag = 'scoped memory for tpu_custom_call.1']
    #allocation12 [shape = 'u8[8192]{0}', space=vmem, size = 0x2000, scoped, tag = 'input window, operand 4, single buffered']
    #allocation13 [shape = 'u8[8192]{0}', space=vmem, size = 0x2000, scoped, tag = 'output window, operand 0, single buffered']
    %12 = vsyncpa [#allocation5], 0
    %13 = vsyncpa [#allocation8], 0
    %14 = vsyncpa [#allocation11], 0
    %15 = vsyncpa [#allocation6], 0
    // Predicated region
    $region2: #{tpu_custom_call.1} parent=1 // pred_check
      _
    $region3: #{tpu_custom_call.1} parent=1 // pred_check_branch
      %17 = sbr.rel (0) target = $region5
    $region4: #{tpu_custom_call.1} parent=1 // pred_region
      %s19 = ssub.s32 1024, 1024
      %20 = vsyncadd [#allocation5], %s19
      %s21 = sshll.u32 [#allocation4], 4
      %s22 = int_to_ptr.vmem [resolvable:$true] %s21
      %27 = dma.hbm_to_vmem [thread:$0]  %s0, 1024, %s22, [#allocation5], 64, 64, 4
    $region5: #{tpu_custom_call.1} parent=1 // pred_fallthru
      _
    // Predicated region
    $region6: #{tpu_custom_call.1} parent=1 // pred_check
      _
    $region7: #{tpu_custom_call.1} parent=1 // pred_check_branch
      %29 = sbr.rel (0) target = $region9
    $region8: #{tpu_custom_call.1} parent=1 // pred_region
      %s31 = ssub.s32 256, 256
      %32 = vsyncadd [#allocation8], %s31
      %s33 = sshll.u32 [#allocation7], 4
      %s34 = int_to_ptr.vmem [resolvable:$true] %s33
      %39 = dma.hbm_to_vmem [thread:$0]  %s1, 256, %s34, [#allocation8], 64, 64, 4
    $region9: #{tpu_custom_call.1} parent=1 // pred_fallthru
      _
    // Predicated region
    $region10: #{tpu_custom_call.1} parent=1 // pred_check
      _
    $region11: #{tpu_custom_call.1} parent=1 // pred_check_branch
      %41 = sbr.rel (0) target = $region13
    $region12: #{tpu_custom_call.1} parent=1 // pred_region
      %s43 = ssub.s32 256, 256
      %44 = vsyncadd [#allocation8], %s43
      %s45 = sshll.u32 [#allocation9], 4
      %s46 = int_to_ptr.vmem [resolvable:$true] %s45
      %51 = dma.hbm_to_vmem [thread:$0]  %s2, 256, %s46, [#allocation8], 64, 64, 4
    $region13: #{tpu_custom_call.1} parent=1 // pred_fallthru
      _
    // Predicated region
    $region14: #{tpu_custom_call.1} parent=1 // pred_check
      _
    $region15: #{tpu_custom_call.1} parent=1 // pred_check_branch
      %53 = sbr.rel (0) target = $region17
    $region16: #{tpu_custom_call.1} parent=1 // pred_region
      %s55 = ssub.s32 256, 256
      %56 = vsyncadd [#allocation11], %s55
      %s57 = sshll.u32 [#allocation10], 4
      %s58 = int_to_ptr.vmem [resolvable:$true] %s57
      %63 = dma.hbm_to_vmem [thread:$0]  %s3, 256, %s58, [#allocation11], 64, 64, 4
    $region17: #{tpu_custom_call.1} parent=1 // pred_fallthru
      _
    // Predicated region
    $region18: #{tpu_custom_call.1} parent=1 // pred_check
      _
    $region19: #{tpu_custom_call.1} parent=1 // pred_check_branch
      %65 = sbr.rel (0) target = $region21
    $region20: #{tpu_custom_call.1} parent=1 // pred_region
      %s67 = ssub.s32 256, 256
      %68 = vsyncadd [#allocation11], %s67
      %s69 = sshll.u32 [#allocation12], 4
      %s70 = int_to_ptr.vmem [resolvable:$true] %s69
      %75 = dma.hbm_to_vmem [thread:$0]  %s4, 256, %s70, [#allocation11], 64, 64, 4
    $region21: #{tpu_custom_call.1} parent=1 // pred_fallthru
      _
    // Predicated region
    $region22: #{tpu_custom_call.1} parent=1 // pred_check
      _
    $region23: #{tpu_custom_call.1} parent=1 // pred_check_branch
      %77 = sbr.rel (0) target = $region25
    $region24: #{tpu_custom_call.1} parent=1 // pred_region
      _
    $region25: #{tpu_custom_call.1} parent=1 // pred_fallthru
      _
    // Predicated region
    $region26: #{tpu_custom_call.1} parent=1 // pred_check
      _
    $region27: #{tpu_custom_call.1} parent=1 // pred_check_branch
      %79 = sbr.rel (0) target = $region29
    $region28: #{tpu_custom_call.1} parent=1 // pred_region
      _
    $region29: #{tpu_custom_call.1} parent=1 // pred_fallthru
      _
    // Predicated region
    $region30: #{tpu_custom_call.1} parent=1 // pred_check
      _
    $region31: #{tpu_custom_call.1} parent=1 // pred_check_branch
      %81 = sbr.rel (0) target = $region33
    $region32: #{tpu_custom_call.1} parent=1 // pred_region
      %82 = dma.done [#allocation5], 1024
    $region33: #{tpu_custom_call.1} parent=1 // pred_fallthru
      _
    // Predicated region
    $region34: #{tpu_custom_call.1} parent=1 // pred_check
      _
    $region35: #{tpu_custom_call.1} parent=1 // pred_check_branch
      %84 = sbr.rel (0) target = $region37
    $region36: #{tpu_custom_call.1} parent=1 // pred_region
      %85 = dma.done [#allocation8], 256
    $region37: #{tpu_custom_call.1} parent=1 // pred_fallthru
      _
    // Predicated region
    $region38: #{tpu_custom_call.1} parent=1 // pred_check
      _
    $region39: #{tpu_custom_call.1} parent=1 // pred_check_branch
      %87 = sbr.rel (0) target = $region41
    $region40: #{tpu_custom_call.1} parent=1 // pred_region
      %88 = dma.done [#allocation8], 256
    $region41: #{tpu_custom_call.1} parent=1 // pred_fallthru
      _
    // Predicated region
    $region42: #{tpu_custom_call.1} parent=1 // pred_check
      _
    $region43: #{tpu_custom_call.1} parent=1 // pred_check_branch
      %90 = sbr.rel (0) target = $region45
    $region44: #{tpu_custom_call.1} parent=1 // pred_region
      %91 = dma.done [#allocation11], 256
    $region45: #{tpu_custom_call.1} parent=1 // pred_fallthru
      _
    // Predicated region
    $region46: #{tpu_custom_call.1} parent=1 // pred_check
      _
    $region47: #{tpu_custom_call.1} parent=1 // pred_check_branch
      %93 = sbr.rel (0) target = $region49
    $region48: #{tpu_custom_call.1} parent=1 // pred_region
      %94 = dma.done [#allocation11], 256
    $region49: #{tpu_custom_call.1} parent=1 // pred_fallthru
      _
    %v96 = vld [vmem:[#allocation4] sm:$0xf]
    %v97 = vld [vmem:[#allocation4 + $0x4] sm:$0xf]
    %v98 = vld [vmem:[#allocation4 + $0x8] sm:$0xf]
    %v99 = vld [vmem:[#allocation4 + $0xc] sm:$0xf]
    %v100 = vld [vmem:[#allocation4 + $0x10] sm:$0xf]
    %v101 = vld [vmem:[#allocation4 + $0x14] sm:$0xf]
    %v102 = vld [vmem:[#allocation4 + $0x18] sm:$0xf]
    %v103 = vld [vmem:[#allocation4 + $0x1c] sm:$0xf]
    %v104 = vld [vmem:[#allocation4 + $0x20] sm:$0xf]
    %v105 = vld [vmem:[#allocation4 + $0x24] sm:$0xf]
    %v106 = vld [vmem:[#allocation4 + $0x28] sm:$0xf]
    %v107 = vld [vmem:[#allocation4 + $0x2c] sm:$0xf]
    %v108 = vld [vmem:[#allocation4 + $0x30] sm:$0xf]
    %v109 = vld [vmem:[#allocation4 + $0x34] sm:$0xf]
    %v110 = vld [vmem:[#allocation4 + $0x38] sm:$0xf]
    %v111 = vld [vmem:[#allocation4 + $0x3c] sm:$0xf]
    %v112 = vld [vmem:[#allocation7] sm:$0xf]
    %v113 = vld [vmem:[#allocation7 + $0x4] sm:$0xf]
    %v114 = vld [vmem:[#allocation7 + $0x8] sm:$0xf]
    %v115 = vld [vmem:[#allocation7 + $0xc] sm:$0xf]
    %v116 = vld [vmem:[%s5] sm:$0x1]
    %v118 = vlaneseq
    %v119 = vshrl.u32 %v118, 7
    %v120 = vsub.s32 0, %v119
    %v121 = vrot.slane %v116, %v120
    %v139 = vunpack.c.l.b16 %v96
    %v140 = vunpack.c.l.b16 %v97
    %v141 = vunpack.c.l.b16 %v98
    %v142 = vunpack.c.l.b16 %v99
    %v143 = vunpack.c.l.b16 %v100
    %v144 = vunpack.c.l.b16 %v101
    %v145 = vunpack.c.l.b16 %v102
    %v146 = vunpack.c.l.b16 %v103
    %v147 = vunpack.c.l.b16 %v104
    %v148 = vunpack.c.l.b16 %v105
    %v149 = vunpack.c.l.b16 %v106
    %v150 = vunpack.c.l.b16 %v107
    %v151 = vunpack.c.l.b16 %v108
    %v152 = vunpack.c.l.b16 %v109
    %v153 = vunpack.c.l.b16 %v110
    %v154 = vunpack.c.l.b16 %v111
    %v155 = vpack.c.b16 %v140, %v139
    %v156 = vpack.c.b16 %v142, %v141
    %v157 = vpack.c.b16 %v144, %v143
    %v158 = vpack.c.b16 %v146, %v145
    %v159 = vpack.c.b16 %v148, %v147
    %v160 = vpack.c.b16 %v150, %v149
    %v161 = vpack.c.b16 %v152, %v151
    %v162 = vpack.c.b16 %v154, %v153
    %v167 = vunpack.c.l.b16 %v112
    %v168 = vunpack.c.l.b16 %v113
    %v169 = vunpack.c.l.b16 %v114
    %v170 = vunpack.c.l.b16 %v115
    %v171 = vpack.c.b16 %v168, %v167
    %v172 = vpack.c.b16 %v170, %v169
    %vm175 = vcmask 261120
    %v177 = vsel %vm175, %v155, 0
    %v180 = vsel %vm175, %v156, 0
    %v183 = vsel %vm175, %v157, 0
    %v186 = vsel %vm175, %v158, 0
    %v189 = vsel %vm175, %v159, 0
    %v192 = vsel %vm175, %v160, 0
    %v195 = vsel %vm175, %v161, 0
    %v198 = vsel %vm175, %v162, 0
    %200 = vmatprep.subr.bf16.mxu0 0
    %201 = vmatpush1.bf16.msra.mxu0 %v171
    %202 = vmatprep.subr.bf16.mxu0 0
    %203 = vmatpush1.bf16.msra.mxu0 %v172
    %204 = vmatprep.subr.bf16.mxu0 0
    %205 = vmatpush1.bf16.msra.mxu0 0
    %206 = vmatprep.subr.bf16.mxu0 0
    %207 = vmatpush1.bf16.msra.mxu0 0
    %208 = vmatprep.subr.bf16.mxu0 0
    %209 = vmatpush1.bf16.msra.mxu0 0
    %210 = vmatprep.subr.bf16.mxu0 0
    %211 = vmatpush1.bf16.msra.mxu0 0
    %212 = vmatprep.subr.bf16.mxu0 0
    %213 = vmatpush1.bf16.msra.mxu0 0
    %214 = vmatprep.subr.bf16.mxu0 0
    %215 = vmatpush1.bf16.msra.mxu0 0
    %216 = vmatprep.subr.bf16.mxu0 0
    %217 = vmatpush1.bf16.msra.mxu0 0
    %218 = vmatprep.subr.bf16.mxu0 0
    %219 = vmatpush1.bf16.msra.mxu0 0
    %220 = vmatprep.subr.bf16.mxu0 0
    %221 = vmatpush1.bf16.msra.mxu0 0
    %222 = vmatprep.subr.bf16.mxu0 0
    %223 = vmatpush1.bf16.msra.mxu0 0
    %224 = vmatprep.subr.bf16.mxu0 0
    %225 = vmatpush1.bf16.msra.mxu0 0
    %226 = vmatprep.subr.bf16.mxu0 0
    %227 = vmatpush1.bf16.msra.mxu0 0
    %228 = vmatprep.subr.bf16.mxu0 0
    %229 = vmatpush1.bf16.msra.mxu0 0
    %230 = vmatprep.subr.bf16.mxu0 0
    %231 = vmatpush1.bf16.msra.mxu0 0
    %232 = vmatprep.mubr.bf16.mxu0 0
    %233 = vmatmul.mubr.bf16.gmra.mrb[0].mxu0 %v177
    %v234 = vpop.f32.mrb[0].mxu0
    %v235 = vadd.f32 %v121, %v234
    %v236 = vpop.f32.mrb[0].mxu0
    %v237 = vpop.f32.mrb[0].mxu0
    %v238 = vadd.f32 %v121, %v237
    %v239 = vpop.f32.mrb[0].mxu0
    %240 = vmatprep.mubr.bf16.mxu0 0
    %241 = vmatmul.mubr.bf16.gmra.mrb[0].mxu0 %v180
    %v242 = vpop.f32.mrb[0].mxu0
    %v243 = vadd.f32 %v121, %v242
    %v244 = vpop.f32.mrb[0].mxu0
    %v245 = vpop.f32.mrb[0].mxu0
    %v246 = vadd.f32 %v121, %v245
    %v247 = vpop.f32.mrb[0].mxu0
    %248 = vmatprep.mubr.bf16.mxu0 0
    %249 = vmatmul.mubr.bf16.gmra.mrb[0].mxu0 %v183
    %v250 = vpop.f32.mrb[0].mxu0
    %v251 = vadd.f32 %v121, %v250
    %v252 = vpop.f32.mrb[0].mxu0
    %v253 = vpop.f32.mrb[0].mxu0
    %v254 = vadd.f32 %v121, %v253
    %v255 = vpop.f32.mrb[0].mxu0
    %256 = vmatprep.mubr.bf16.mxu0 0
    %257 = vmatmul.mubr.bf16.gmra.mrb[0].mxu0 %v186
    %v258 = vpop.f32.mrb[0].mxu0
    %v259 = vadd.f32 %v121, %v258
    %v260 = vpop.f32.mrb[0].mxu0
    %v261 = vpop.f32.mrb[0].mxu0
    %v262 = vadd.f32 %v121, %v261
    %v263 = vpop.f32.mrb[0].mxu0
    %264 = vmatprep.mubr.bf16.mxu0 0
    %265 = vmatmul.mubr.bf16.gmra.mrb[0].mxu0 %v189
    %v266 = vpop.f32.mrb[0].mxu0
    %v267 = vadd.f32 %v121, %v266
    %v268 = vpop.f32.mrb[0].mxu0
    %v269 = vpop.f32.mrb[0].mxu0
    %v270 = vadd.f32 %v121, %v269
    %v271 = vpop.f32.mrb[0].mxu0
    %272 = vmatprep.mubr.bf16.mxu0 0
    %273 = vmatmul.mubr.bf16.gmra.mrb[0].mxu0 %v192
    %v274 = vpop.f32.mrb[0].mxu0
    %v275 = vadd.f32 %v121, %v274
    %v276 = vpop.f32.mrb[0].mxu0
    %v277 = vpop.f32.mrb[0].mxu0
    %v278 = vadd.f32 %v121, %v277
    %v279 = vpop.f32.mrb[0].mxu0
    %280 = vmatprep.mubr.bf16.mxu0 0
    %281 = vmatmul.mubr.bf16.gmra.mrb[0].mxu0 %v195
    %v282 = vpop.f32.mrb[0].mxu0
    %v283 = vadd.f32 %v121, %v282
    %v284 = vpop.f32.mrb[0].mxu0
    %v285 = vpop.f32.mrb[0].mxu0
    %v286 = vadd.f32 %v121, %v285
    %v287 = vpop.f32.mrb[0].mxu0
    %288 = vmatprep.mubr.bf16.mxu0 0
    %289 = vmatmul.mubr.bf16.gmra.mrb[0].mxu0 %v198
    %v290 = vpop.f32.mrb[0].mxu0
    %v291 = vadd.f32 %v121, %v290
    %v292 = vpop.f32.mrb[0].mxu0
    %v293 = vpop.f32.mrb[0].mxu0
    %v294 = vadd.f32 %v121, %v293
    %v295 = vpop.f32.mrb[0].mxu0
    %296 = vdwg.mxu0
    %297 = vst [vmem:[#allocation2] sm:$0xff] %v235
    %298 = vst [vmem:[#allocation2 + $0x8] sm:$0xff] %v238
    %299 = vst [vmem:[#allocation2 + $0x10] sm:$0xff] %v243
    %300 = vst [vmem:[#allocation2 + $0x18] sm:$0xff] %v246
    %301 = vst [vmem:[#allocation2 + $0x20] sm:$0xff] %v251
    %302 = vst [vmem:[#allocation2 + $0x28] sm:$0xff] %v254
    %303 = vst [vmem:[#allocation2 + $0x30] sm:$0xff] %v259
    %304 = vst [vmem:[#allocation2 + $0x38] sm:$0xff] %v262
    %305 = vst [vmem:[#allocation2 + $0x40] sm:$0xff] %v267
    %306 = vst [vmem:[#allocation2 + $0x48] sm:$0xff] %v270
    %307 = vst [vmem:[#allocation2 + $0x50] sm:$0xff] %v275
    %308 = vst [vmem:[#allocation2 + $0x58] sm:$0xff] %v278
    %309 = vst [vmem:[#allocation2 + $0x60] sm:$0xff] %v283
    %310 = vst [vmem:[#allocation2 + $0x68] sm:$0xff] %v286
    %311 = vst [vmem:[#allocation2 + $0x70] sm:$0xff] %v291
    %312 = vst [vmem:[#allocation2 + $0x78] sm:$0xff] %v294
    %v313 = vld [vmem:[#allocation9] sm:$0xf]
    %v314 = vld [vmem:[#allocation9 + $0x4] sm:$0xf]
    %v315 = vld [vmem:[#allocation9 + $0x8] sm:$0xf]
    %v316 = vld [vmem:[#allocation9 + $0xc] sm:$0xf]
    %v317 = vld [vmem:[%s6] sm:$0x1]
    %v319 = vlaneseq
    %v320 = vshrl.u32 %v319, 7
    %v321 = vsub.s32 0, %v320
    %v322 = vrot.slane %v317, %v321
    %v328 = vunpack.c.l.b16 %v313
    %v329 = vunpack.c.l.b16 %v314
    %v330 = vunpack.c.l.b16 %v315
    %v331 = vunpack.c.l.b16 %v316
    %v332 = vpack.c.b16 %v329, %v328
    %v333 = vpack.c.b16 %v331, %v330
    %336 = vmatprep.subr.bf16.mxu0 0
    %337 = vmatpush1.bf16.msra.mxu0 %v332
    %338 = vmatprep.subr.bf16.mxu0 0
    %339 = vmatpush1.bf16.msra.mxu0 %v333
    %340 = vmatprep.subr.bf16.mxu0 0
    %341 = vmatpush1.bf16.msra.mxu0 0
    %342 = vmatprep.subr.bf16.mxu0 0
    %343 = vmatpush1.bf16.msra.mxu0 0
    %344 = vmatprep.subr.bf16.mxu0 0
    %345 = vmatpush1.bf16.msra.mxu0 0
    %346 = vmatprep.subr.bf16.mxu0 0
    %347 = vmatpush1.bf16.msra.mxu0 0
    %348 = vmatprep.subr.bf16.mxu0 0
    %349 = vmatpush1.bf16.msra.mxu0 0
    %350 = vmatprep.subr.bf16.mxu0 0
    %351 = vmatpush1.bf16.msra.mxu0 0
    %352 = vmatprep.subr.bf16.mxu0 0
    %353 = vmatpush1.bf16.msra.mxu0 0
    %354 = vmatprep.subr.bf16.mxu0 0
    %355 = vmatpush1.bf16.msra.mxu0 0
    %356 = vmatprep.subr.bf16.mxu0 0
    %357 = vmatpush1.bf16.msra.mxu0 0
    %358 = vmatprep.subr.bf16.mxu0 0
    %359 = vmatpush1.bf16.msra.mxu0 0
    %360 = vmatprep.subr.bf16.mxu0 0
    %361 = vmatpush1.bf16.msra.mxu0 0
    %362 = vmatprep.subr.bf16.mxu0 0
    %363 = vmatpush1.bf16.msra.mxu0 0
    %364 = vmatprep.subr.bf16.mxu0 0
    %365 = vmatpush1.bf16.msra.mxu0 0
    %366 = vmatprep.subr.bf16.mxu0 0
    %367 = vmatpush1.bf16.msra.mxu0 0
    %368 = vmatprep.mubr.bf16.mxu0 0
    %369 = vmatmul.mubr.bf16.gmra.mrb[0].mxu0 %v177
    %v370 = vpop.f32.mrb[0].mxu0
    %v371 = vadd.f32 %v322, %v370
    %v372 = vpop.f32.mrb[0].mxu0
    %v373 = vpop.f32.mrb[0].mxu0
    %v374 = vadd.f32 %v322, %v373
    %v375 = vpop.f32.mrb[0].mxu0
    %376 = vmatprep.mubr.bf16.mxu0 0
    %377 = vmatmul.mubr.bf16.gmra.mrb[0].mxu0 %v180
    %v378 = vpop.f32.mrb[0].mxu0
    %v379 = vadd.f32 %v322, %v378
    %v380 = vpop.f32.mrb[0].mxu0
    %v381 = vpop.f32.mrb[0].mxu0
    %v382 = vadd.f32 %v322, %v381
    %v383 = vpop.f32.mrb[0].mxu0
    %384 = vmatprep.mubr.bf16.mxu0 0
    %385 = vmatmul.mubr.bf16.gmra.mrb[0].mxu0 %v183
    %v386 = vpop.f32.mrb[0].mxu0
    %v387 = vadd.f32 %v322, %v386
    %v388 = vpop.f32.mrb[0].mxu0
    %v389 = vpop.f32.mrb[0].mxu0
    %v390 = vadd.f32 %v322, %v389
    %v391 = vpop.f32.mrb[0].mxu0
    %392 = vmatprep.mubr.bf16.mxu0 0
    %393 = vmatmul.mubr.bf16.gmra.mrb[0].mxu0 %v186
    %v394 = vpop.f32.mrb[0].mxu0
    %v395 = vadd.f32 %v322, %v394
    %v396 = vpop.f32.mrb[0].mxu0
    %v397 = vpop.f32.mrb[0].mxu0
    %v398 = vadd.f32 %v322, %v397
    %v399 = vpop.f32.mrb[0].mxu0
    %400 = vmatprep.mubr.bf16.mxu0 0
    %401 = vmatmul.mubr.bf16.gmra.mrb[0].mxu0 %v189
    %v402 = vpop.f32.mrb[0].mxu0
    %v403 = vadd.f32 %v322, %v402
    %v404 = vpop.f32.mrb[0].mxu0
    %v405 = vpop.f32.mrb[0].mxu0
    %v406 = vadd.f32 %v322, %v405
    %v407 = vpop.f32.mrb[0].mxu0
    %408 = vmatprep.mubr.bf16.mxu0 0
    %409 = vmatmul.mubr.bf16.gmra.mrb[0].mxu0 %v192
    %v410 = vpop.f32.mrb[0].mxu0
    %v411 = vadd.f32 %v322, %v410
    %v412 = vpop.f32.mrb[0].mxu0
    %v413 = vpop.f32.mrb[0].mxu0
    %v414 = vadd.f32 %v322, %v413
    %v415 = vpop.f32.mrb[0].mxu0
    %416 = vmatprep.mubr.bf16.mxu0 0
    %417 = vmatmul.mubr.bf16.gmra.mrb[0].mxu0 %v195
    %v418 = vpop.f32.mrb[0].mxu0
    %v419 = vadd.f32 %v322, %v418
    %v420 = vpop.f32.mrb[0].mxu0
    %v421 = vpop.f32.mrb[0].mxu0
    %v422 = vadd.f32 %v322, %v421
    %v423 = vpop.f32.mrb[0].mxu0
    %424 = vmatprep.mubr.bf16.mxu0 0
    %425 = vmatmul.mubr.bf16.gmra.mrb[0].mxu0 %v198
    %v426 = vpop.f32.mrb[0].mxu0
    %v427 = vadd.f32 %v322, %v426
    %v428 = vpop.f32.mrb[0].mxu0
    %v429 = vpop.f32.mrb[0].mxu0
    %v430 = vadd.f32 %v322, %v429
    %v431 = vpop.f32.mrb[0].mxu0
    %432 = vdwg.mxu0
    %433 = vst [vmem:[#allocation3] sm:$0xff] %v371
    %434 = vst [vmem:[#allocation3 + $0x8] sm:$0xff] %v374
    %435 = vst [vmem:[#allocation3 + $0x10] sm:$0xff] %v379
    %436 = vst [vmem:[#allocation3 + $0x18] sm:$0xff] %v382
    %437 = vst [vmem:[#allocation3 + $0x20] sm:$0xff] %v387
    %438 = vst [vmem:[#allocation3 + $0x28] sm:$0xff] %v390
    %439 = vst [vmem:[#allocation3 + $0x30] sm:$0xff] %v395
    %440 = vst [vmem:[#allocation3 + $0x38] sm:$0xff] %v398
    %441 = vst [vmem:[#allocation3 + $0x40] sm:$0xff] %v403
    %442 = vst [vmem:[#allocation3 + $0x48] sm:$0xff] %v406
    %443 = vst [vmem:[#allocation3 + $0x50] sm:$0xff] %v411
    %444 = vst [vmem:[#allocation3 + $0x58] sm:$0xff] %v414
    %445 = vst [vmem:[#allocation3 + $0x60] sm:$0xff] %v419
    %446 = vst [vmem:[#allocation3 + $0x68] sm:$0xff] %v422
    %447 = vst [vmem:[#allocation3 + $0x70] sm:$0xff] %v427
    %448 = vst [vmem:[#allocation3 + $0x78] sm:$0xff] %v430
    %v449 = vld [vmem:[#allocation10] sm:$0xf]
    %v450 = vld [vmem:[#allocation10 + $0x4] sm:$0xf]
    %v451 = vld [vmem:[#allocation10 + $0x8] sm:$0xf]
    %v452 = vld [vmem:[#allocation10 + $0xc] sm:$0xf]
    %v453 = vld [vmem:[#allocation12] sm:$0xf]
    %v454 = vld [vmem:[#allocation12 + $0x4] sm:$0xf]
    %v455 = vld [vmem:[#allocation12 + $0x8] sm:$0xf]
    %v456 = vld [vmem:[#allocation12 + $0xc] sm:$0xf]
    %v457 = vld [vmem:[#allocation2] sm:$0xff]
    %v458 = vld [vmem:[#allocation2 + $0x8] sm:$0xff]
    %v463 = vunpack.c.l.b16 %v449
    %v464 = vunpack.c.l.b16 %v450
    %v465 = vunpack.c.l.b16 %v451
    %v466 = vunpack.c.l.b16 %v452
    %v467 = vpack.c.b16 %v464, %v463
    %v468 = vpack.c.b16 %v466, %v465
    %v472 = vsel %vm175, 0, 0
    %474 = vmatprep.subr.bf16.mxu0 0
    %475 = vmatpush1.bf16.msra.mxu0 %v467
    %476 = vmatprep.subr.bf16.mxu0 0
    %477 = vmatpush1.bf16.msra.mxu0 %v468
    %478 = vmatprep.subr.bf16.mxu0 0
    %479 = vmatpush1.bf16.msra.mxu0 0
    %480 = vmatprep.subr.bf16.mxu0 0
    %481 = vmatpush1.bf16.msra.mxu0 0
    %482 = vmatprep.subr.bf16.mxu0 0
    %483 = vmatpush1.bf16.msra.mxu0 0
    %484 = vmatprep.subr.bf16.mxu0 0
    %485 = vmatpush1.bf16.msra.mxu0 0
    %486 = vmatprep.subr.bf16.mxu0 0
    %487 = vmatpush1.bf16.msra.mxu0 0
    %488 = vmatprep.subr.bf16.mxu0 0
    %489 = vmatpush1.bf16.msra.mxu0 0
    %490 = vmatprep.subr.bf16.mxu0 0
    %491 = vmatpush1.bf16.msra.mxu0 0
    %492 = vmatprep.subr.bf16.mxu0 0
    %493 = vmatpush1.bf16.msra.mxu0 0
    %494 = vmatprep.subr.bf16.mxu0 0
    %495 = vmatpush1.bf16.msra.mxu0 0
    %496 = vmatprep.subr.bf16.mxu0 0
    %497 = vmatpush1.bf16.msra.mxu0 0
    %498 = vmatprep.subr.bf16.mxu0 0
    %499 = vmatpush1.bf16.msra.mxu0 0
    %500 = vmatprep.subr.bf16.mxu0 0
    %501 = vmatpush1.bf16.msra.mxu0 0
    %502 = vmatprep.subr.bf16.mxu0 0
    %503 = vmatpush1.bf16.msra.mxu0 0
    %504 = vmatprep.subr.bf16.mxu0 0
    %505 = vmatpush1.bf16.msra.mxu0 0
    %506 = vmatprep.mubr.bf16.mxu0 0
    %507 = vmatmul.mubr.bf16.gmra.mrb[0].mxu0 %v472
    %v508 = vpop.f32.mrb[0].mxu0
    %v509 = vadd.f32 0.0, %v508
    %v510 = vpop.f32.mrb[0].mxu0
    %v511 = vpop.f32.mrb[0].mxu0
    %v512 = vadd.f32 0.0, %v511
    %v513 = vpop.f32.mrb[0].mxu0
    %514 = vdwg.mxu0
    %v515 = vadd.f32 %v457, %v509
    %v516 = vadd.f32 %v458, %v512
    %v517 = vxor.u32 %v515, 2147483648
    %v518 = vxor.u32 %v516, 2147483648
    %v519 = vmul.f32 %v517, 1.442695
    %v520 = vpow.pop %v519
    %v521 = vmul.f32 %v518, 1.442695
    %v522 = vpow.pop %v521
    %v523 = vadd.f32 %v520, 1.0
    %v524 = vadd.f32 %v522, 1.0
    %v525 = vrcp.pop %v523
    %v526 = vmul.f32 1.0, %v525
    %v527 = vrcp.pop %v524
    %v528 = vmul.f32 1.0, %v527
    %v529 = vtanh.pop %v515
    %v530 = vtanh.pop %v516
    %v531 = vmul.f32 %v526, 0.0
    %v532 = vmul.f32 %v528, 0.0
    %535 = vrot.lane.b32.xlu0 %v529, 64
    %v536 = vpop.permute.xlu0 %535
    %537 = vrot.lane.b32.xlu0 %v530, 64
    %v538 = vpop.permute.xlu0 %537
    %v541 = vmul.f32 %v526, %v536
    %v542 = vmul.f32 %v528, %v538
    %545 = vrot.lane.b32.xlu0 %v541, 32
    %v546 = vpop.permute.xlu0 %545
    %547 = vrot.lane.b32.xlu0 %v542, 32
    %v548 = vpop.permute.xlu0 %547
    %v551 = vadd.f32 %v531, %v546
    %v552 = vadd.f32 %v532, %v548
    %v553 = vtanh.pop %v551
    %v554 = vtanh.pop %v552
    %557 = vrot.lane.b32.xlu0 %v553, 64
    %v558 = vpop.permute.xlu0 %557
    %559 = vrot.lane.b32.xlu0 %v554, 64
    %v560 = vpop.permute.xlu0 %559
    %v563 = vmul.f32 %v526, %v558
    %v564 = vmul.f32 %v528, %v560
    %s565 = scalar_lea.vmem [#allocation3], 112
    %v566 = vld [vmem:[%s565] sm:$0xff]
    %v567 = vld [vmem:[%s565 + $0x8] sm:$0xff]
    %v572 = vunpack.c.l.b16 %v453
    %v573 = vunpack.c.l.b16 %v454
    %v574 = vunpack.c.l.b16 %v455
    %v575 = vunpack.c.l.b16 %v456
    %v576 = vpack.c.b16 %v573, %v572
    %v577 = vpack.c.b16 %v575, %v574
    %580 = vmatprep.subr.bf16.mxu0 0
    %581 = vmatpush1.bf16.msra.mxu0 %v576
    %582 = vmatprep.subr.bf16.mxu0 0
    %583 = vmatpush1.bf16.msra.mxu0 %v577
    %584 = vmatprep.subr.bf16.mxu0 0
    %585 = vmatpush1.bf16.msra.mxu0 0
    %586 = vmatprep.subr.bf16.mxu0 0
    %587 = vmatpush1.bf16.msra.mxu0 0
    %588 = vmatprep.subr.bf16.mxu0 0
    %589 = vmatpush1.bf16.msra.mxu0 0
    %590 = vmatprep.subr.bf16.mxu0 0
    %591 = vmatpush1.bf16.msra.mxu0 0
    %592 = vmatprep.subr.bf16.mxu0 0
    %593 = vmatpush1.bf16.msra.mxu0 0
    %594 = vmatprep.subr.bf16.mxu0 0
    %595 = vmatpush1.bf16.msra.mxu0 0
    %596 = vmatprep.subr.bf16.mxu0 0
    %597 = vmatpush1.bf16.msra.mxu0 0
    %598 = vmatprep.subr.bf16.mxu0 0
    %599 = vmatpush1.bf16.msra.mxu0 0
    %600 = vmatprep.subr.bf16.mxu0 0
    %601 = vmatpush1.bf16.msra.mxu0 0
    %602 = vmatprep.subr.bf16.mxu0 0
    %603 = vmatpush1.bf16.msra.mxu0 0
    %604 = vmatprep.subr.bf16.mxu0 0
    %605 = vmatpush1.bf16.msra.mxu0 0
    %606 = vmatprep.subr.bf16.mxu0 0
    %607 = vmatpush1.bf16.msra.mxu0 0
    %608 = vmatprep.subr.bf16.mxu0 0
    %609 = vmatpush1.bf16.msra.mxu0 0
    %610 = vmatprep.subr.bf16.mxu0 0
    %611 = vmatpush1.bf16.msra.mxu0 0
    %612 = vmatprep.mubr.bf16.mxu0 0
    %613 = vmatmul.mubr.bf16.gmra.mrb[0].mxu0 %v472
    %v614 = vpop.f32.mrb[0].mxu0
    %v615 = vadd.f32 0.0, %v614
    %v616 = vpop.f32.mrb[0].mxu0
    %v617 = vpop.f32.mrb[0].mxu0
    %v618 = vadd.f32 0.0, %v617
    %v619 = vpop.f32.mrb[0].mxu0
    %620 = vdwg.mxu0
    %v621 = vadd.f32 %v566, %v615
    %v622 = vadd.f32 %v567, %v618
    %v623 = vxor.u32 %v621, 2147483648
    %v624 = vxor.u32 %v622, 2147483648
    %v625 = vmul.f32 %v623, 1.442695
    %v626 = vpow.pop %v625
    %v627 = vmul.f32 %v624, 1.442695
    %v628 = vpow.pop %v627
    %v629 = vadd.f32 %v626, 1.0
    %v630 = vadd.f32 %v628, 1.0
    %v631 = vrcp.pop %v629
    %v632 = vmul.f32 1.0, %v631
    %v633 = vrcp.pop %v630
    %v634 = vmul.f32 1.0, %v633
    %v635 = vtanh.pop %v621
    %v636 = vtanh.pop %v622
    %v637 = vmul.f32 %v632, 0.0
    %v638 = vmul.f32 %v634, 0.0
    %641 = vrot.lane.b32.xlu0 %v635, 64
    %v642 = vpop.permute.xlu0 %641
    %643 = vrot.lane.b32.xlu0 %v636, 64
    %v644 = vpop.permute.xlu0 %643
    %v647 = vmul.f32 %v632, %v642
    %v648 = vmul.f32 %v634, %v644
    %651 = vrot.lane.b32.xlu0 %v647, 32
    %v652 = vpop.permute.xlu0 %651
    %653 = vrot.lane.b32.xlu0 %v648, 32
    %v654 = vpop.permute.xlu0 %653
    %v657 = vadd.f32 %v637, %v652
    %v658 = vadd.f32 %v638, %v654
    %v659 = vtanh.pop %v657
    %v660 = vtanh.pop %v658
    %663 = vrot.lane.b32.xlu0 %v659, 64
    %v664 = vpop.permute.xlu0 %663
    %665 = vrot.lane.b32.xlu0 %v660, 64
    %v666 = vpop.permute.xlu0 %665
    %v669 = vmul.f32 %v632, %v664
    %v670 = vmul.f32 %v634, %v666
    %v671 = vadd.f32 %v563, %v669
    %v672 = vadd.f32 %v564, %v670
    %675 = vrot.lane.b32.xlu0 %v671, 32
    %v676 = vpop.permute.xlu0 %675
    %677 = vrot.lane.b32.xlu0 %v672, 32
    %v678 = vpop.permute.xlu0 %677
    %v681 = vsel %vm175, %v676, 0.0
    %682 = vadd.xlane.f32.xlu0 %v681
    %v683 = vpop.xlane.xlu0 %682
    %v684 = vsel %vm175, %v678, 0.0
    %685 = vadd.xlane.f32.xlu0 %v684
    %v686 = vpop.xlane.xlu0 %685
    %v687 = vadd.f32 %v683, 0.0
    %v688 = vadd.f32 %v686, 0.0
    %s689 = scalar_lea.vmem [#allocation2], 16
    %v690 = vld [vmem:[%s689] sm:$0xff]
    %v691 = vld [vmem:[%s689 + $0x8] sm:$0xff]
    %v692 = vpack.c.bf16 %v564, %v563
    %694 = vrot.lane.b32.xlu0 %v692, 32
    %v695 = vpop.permute.xlu0 %694
    %v697 = vsel %vm175, %v695, 0
    %699 = vmatprep.subr.bf16.mxu0 0
    %700 = vmatpush1.bf16.msra.mxu0 %v467
    %701 = vmatprep.subr.bf16.mxu0 0
    %702 = vmatpush1.bf16.msra.mxu0 %v468
    %703 = vmatprep.subr.bf16.mxu0 0
    %704 = vmatpush1.bf16.msra.mxu0 0
    %705 = vmatprep.subr.bf16.mxu0 0
    %706 = vmatpush1.bf16.msra.mxu0 0
    %707 = vmatprep.subr.bf16.mxu0 0
    %708 = vmatpush1.bf16.msra.mxu0 0
    %709 = vmatprep.subr.bf16.mxu0 0
    %710 = vmatpush1.bf16.msra.mxu0 0
    %711 = vmatprep.subr.bf16.mxu0 0
    %712 = vmatpush1.bf16.msra.mxu0 0
    %713 = vmatprep.subr.bf16.mxu0 0
    %714 = vmatpush1.bf16.msra.mxu0 0
    %715 = vmatprep.subr.bf16.mxu0 0
    %716 = vmatpush1.bf16.msra.mxu0 0
    %717 = vmatprep.subr.bf16.mxu0 0
    %718 = vmatpush1.bf16.msra.mxu0 0
    %719 = vmatprep.subr.bf16.mxu0 0
    %720 = vmatpush1.bf16.msra.mxu0 0
    %721 = vmatprep.subr.bf16.mxu0 0
    %722 = vmatpush1.bf16.msra.mxu0 0
    %723 = vmatprep.subr.bf16.mxu0 0
    %724 = vmatpush1.bf16.msra.mxu0 0
    %725 = vmatprep.subr.bf16.mxu0 0
    %726 = vmatpush1.bf16.msra.mxu0 0
    %727 = vmatprep.subr.bf16.mxu0 0
    %728 = vmatpush1.bf16.msra.mxu0 0
    %729 = vmatprep.subr.bf16.mxu0 0
    %730 = vmatpush1.bf16.msra.mxu0 0
    %731 = vmatprep.mubr.bf16.mxu0 0
    %732 = vmatmul.mubr.bf16.gmra.mrb[0].mxu0 %v697
    %v733 = vpop.f32.mrb[0].mxu0
    %v734 = vadd.f32 0.0, %v733
    %v735 = vpop.f32.mrb[0].mxu0
    %v736 = vpop.f32.mrb[0].mxu0
    %v737 = vadd.f32 0.0, %v736
    %v738 = vpop.f32.mrb[0].mxu0
    %739 = vdwg.mxu0
    %v740 = vadd.f32 %v690, %v734
    %v741 = vadd.f32 %v691, %v737
    %v742 = vxor.u32 %v740, 2147483648
    %v743 = vxor.u32 %v741, 2147483648
    %v744 = vmul.f32 %v742, 1.442695
    %v745 = vpow.pop %v744
    %v746 = vmul.f32 %v743, 1.442695
    %v747 = vpow.pop %v746
    %v748 = vadd.f32 %v745, 1.0
    %v749 = vadd.f32 %v747, 1.0
    %v750 = vrcp.pop %v748
    %v751 = vmul.f32 1.0, %v750
    %v752 = vrcp.pop %v749
    %v753 = vmul.f32 1.0, %v752
    %v754 = vtanh.pop %v740
    %v755 = vtanh.pop %v741
    %v756 = vmul.f32 %v751, %v551
    %v757 = vmul.f32 %v753, %v552
    %760 = vrot.lane.b32.xlu0 %v754, 64
    %v761 = vpop.permute.xlu0 %760
    %762 = vrot.lane.b32.xlu0 %v755, 64
    %v763 = vpop.permute.xlu0 %762
    %v766 = vmul.f32 %v751, %v761
    %v767 = vmul.f32 %v753, %v763
    %770 = vrot.lane.b32.xlu0 %v766, 32
    %v771 = vpop.permute.xlu0 %770
    %772 = vrot.lane.b32.xlu0 %v767, 32
    %v773 = vpop.permute.xlu0 %772
    %v776 = vadd.f32 %v756, %v771
    %v777 = vadd.f32 %v757, %v773
    %v778 = vtanh.pop %v776
    %v779 = vtanh.pop %v777
    %782 = vrot.lane.b32.xlu0 %v778, 64
    %v783 = vpop.permute.xlu0 %782
    %784 = vrot.lane.b32.xlu0 %v779, 64
    %v785 = vpop.permute.xlu0 %784
    %v788 = vmul.f32 %v751, %v783
    %v789 = vmul.f32 %v753, %v785
    %s790 = scalar_lea.vmem [#allocation3], 96
    %v791 = vld [vmem:[%s790] sm:$0xff]
    %v792 = vld [vmem:[%s790 + $0x8] sm:$0xff]
    %v793 = vpack.c.bf16 %v670, %v669
    %795 = vrot.lane.b32.xlu0 %v793, 32
    %v796 = vpop.permute.xlu0 %795
    %v798 = vsel %vm175, %v796, 0
    %800 = vmatprep.subr.bf16.mxu0 0
    %801 = vmatpush1.bf16.msra.mxu0 %v576
    %802 = vmatprep.subr.bf16.mxu0 0
    %803 = vmatpush1.bf16.msra.mxu0 %v577
    %804 = vmatprep.subr.bf16.mxu0 0
    %805 = vmatpush1.bf16.msra.mxu0 0
    %806 = vmatprep.subr.bf16.mxu0 0
    %807 = vmatpush1.bf16.msra.mxu0 0
    %808 = vmatprep.subr.bf16.mxu0 0
    %809 = vmatpush1.bf16.msra.mxu0 0
    %810 = vmatprep.subr.bf16.mxu0 0
    %811 = vmatpush1.bf16.msra.mxu0 0
    %812 = vmatprep.subr.bf16.mxu0 0
    %813 = vmatpush1.bf16.msra.mxu0 0
    %814 = vmatprep.subr.bf16.mxu0 0
    %815 = vmatpush1.bf16.msra.mxu0 0
    %816 = vmatprep.subr.bf16.mxu0 0
    %817 = vmatpush1.bf16.msra.mxu0 0
    %818 = vmatprep.subr.bf16.mxu0 0
    %819 = vmatpush1.bf16.msra.mxu0 0
    %820 = vmatprep.subr.bf16.mxu0 0
    %821 = vmatpush1.bf16.msra.mxu0 0
    %822 = vmatprep.subr.bf16.mxu0 0
    %823 = vmatpush1.bf16.msra.mxu0 0
    %824 = vmatprep.subr.bf16.mxu0 0
    %825 = vmatpush1.bf16.msra.mxu0 0
    %826 = vmatprep.subr.bf16.mxu0 0
    %827 = vmatpush1.bf16.msra.mxu0 0
    %828 = vmatprep.subr.bf16.mxu0 0
    %829 = vmatpush1.bf16.msra.mxu0 0
    %830 = vmatprep.subr.bf16.mxu0 0
    %831 = vmatpush1.bf16.msra.mxu0 0
    %832 = vmatprep.mubr.bf16.mxu0 0
    %833 = vmatmul.mubr.bf16.gmra.mrb[0].mxu0 %v798
    %v834 = vpop.f32.mrb[0].mxu0
    %v835 = vadd.f32 0.0, %v834
    %v836 = vpop.f32.mrb[0].mxu0
    %v837 = vpop.f32.mrb[0].mxu0
    %v838 = vadd.f32 0.0, %v837
    %v839 = vpop.f32.mrb[0].mxu0
    %840 = vdwg.mxu0
    %v841 = vadd.f32 %v791, %v835
    %v842 = vadd.f32 %v792, %v838
    %v843 = vxor.u32 %v841, 2147483648
    %v844 = vxor.u32 %v842, 2147483648
    %v845 = vmul.f32 %v843, 1.442695
    %v846 = vpow.pop %v845
    %v847 = vmul.f32 %v844, 1.442695
    %v848 = vpow.pop %v847
    %v849 = vadd.f32 %v846, 1.0
    %v850 = vadd.f32 %v848, 1.0
    %v851 = vrcp.pop %v849
    %v852 = vmul.f32 1.0, %v851
    %v853 = vrcp.pop %v850
    %v854 = vmul.f32 1.0, %v853
    %v855 = vtanh.pop %v841
    %v856 = vtanh.pop %v842
    %v857 = vmul.f32 %v852, %v657
    %v858 = vmul.f32 %v854, %v658
    %861 = vrot.lane.b32.xlu0 %v855, 64
    %v862 = vpop.permute.xlu0 %861
    %863 = vrot.lane.b32.xlu0 %v856, 64
    %v864 = vpop.permute.xlu0 %863
    %v867 = vmul.f32 %v852, %v862
    %v868 = vmul.f32 %v854, %v864
    %871 = vrot.lane.b32.xlu0 %v867, 32
    %v872 = vpop.permute.xlu0 %871
    %873 = vrot.lane.b32.xlu0 %v868, 32
    %v874 = vpop.permute.xlu0 %873
    %v877 = vadd.f32 %v857, %v872
    %v878 = vadd.f32 %v858, %v874
    %v879 = vtanh.pop %v877
    %v880 = vtanh.pop %v878
    %883 = vrot.lane.b32.xlu0 %v879, 64
    %v884 = vpop.permute.xlu0 %883
    %885 = vrot.lane.b32.xlu0 %v880, 64
    %v886 = vpop.permute.xlu0 %885
    %v889 = vmul.f32 %v852, %v884
    %v890 = vmul.f32 %v854, %v886
    %v891 = vadd.f32 %v788, %v889
    %v892 = vadd.f32 %v789, %v890
    %895 = vrot.lane.b32.xlu0 %v891, 32
    %v896 = vpop.permute.xlu0 %895
    %897 = vrot.lane.b32.xlu0 %v892, 32
    %v898 = vpop.permute.xlu0 %897
    %v901 = vsel %vm175, %v896, 0.0
    %902 = vadd.xlane.f32.xlu0 %v901
    %v903 = vpop.xlane.xlu0 %902
    %v904 = vsel %vm175, %v898, 0.0
    %905 = vadd.xlane.f32.xlu0 %v904
    %v906 = vpop.xlane.xlu0 %905
    %v907 = vadd.f32 %v687, %v903
    %v908 = vadd.f32 %v688, %v906
    %s909 = scalar_lea.vmem [#allocation2], 32
    %v910 = vld [vmem:[%s909] sm:$0xff]
    %v911 = vld [vmem:[%s909 + $0x8] sm:$0xff]
    %v912 = vpack.c.bf16 %v789, %v788
    %914 = vrot.lane.b32.xlu0 %v912, 32
    %v915 = vpop.permute.xlu0 %914
    %v917 = vsel %vm175, %v915, 0
    %919 = vmatprep.subr.bf16.mxu0 0
    %920 = vmatpush1.bf16.msra.mxu0 %v467
    %921 = vmatprep.subr.bf16.mxu0 0
    %922 = vmatpush1.bf16.msra.mxu0 %v468
    %923 = vmatprep.subr.bf16.mxu0 0
    %924 = vmatpush1.bf16.msra.mxu0 0
    %925 = vmatprep.subr.bf16.mxu0 0
    %926 = vmatpush1.bf16.msra.mxu0 0
    %927 = vmatprep.subr.bf16.mxu0 0
    %928 = vmatpush1.bf16.msra.mxu0 0
    %929 = vmatprep.subr.bf16.mxu0 0
    %930 = vmatpush1.bf16.msra.mxu0 0
    %931 = vmatprep.subr.bf16.mxu0 0
    %932 = vmatpush1.bf16.msra.mxu0 0
    %933 = vmatprep.subr.bf16.mxu0 0
    %934 = vmatpush1.bf16.msra.mxu0 0
    %935 = vmatprep.subr.bf16.mxu0 0
    %936 = vmatpush1.bf16.msra.mxu0 0
    %937 = vmatprep.subr.bf16.mxu0 0
    %938 = vmatpush1.bf16.msra.mxu0 0
    %939 = vmatprep.subr.bf16.mxu0 0
    %940 = vmatpush1.bf16.msra.mxu0 0
    %941 = vmatprep.subr.bf16.mxu0 0
    %942 = vmatpush1.bf16.msra.mxu0 0
    %943 = vmatprep.subr.bf16.mxu0 0
    %944 = vmatpush1.bf16.msra.mxu0 0
    %945 = vmatprep.subr.bf16.mxu0 0
    %946 = vmatpush1.bf16.msra.mxu0 0
    %947 = vmatprep.subr.bf16.mxu0 0
    %948 = vmatpush1.bf16.msra.mxu0 0
    %949 = vmatprep.subr.bf16.mxu0 0
    %950 = vmatpush1.bf16.msra.mxu0 0
    %951 = vmatprep.mubr.bf16.mxu0 0
    %952 = vmatmul.mubr.bf16.gmra.mrb[0].mxu0 %v917
    %v953 = vpop.f32.mrb[0].mxu0
    %v954 = vadd.f32 0.0, %v953
    %v955 = vpop.f32.mrb[0].mxu0
    %v956 = vpop.f32.mrb[0].mxu0
    %v957 = vadd.f32 0.0, %v956
    %v958 = vpop.f32.mrb[0].mxu0
    %959 = vdwg.mxu0
    %v960 = vadd.f32 %v910, %v954
    %v961 = vadd.f32 %v911, %v957
    %v962 = vxor.u32 %v960, 2147483648
    %v963 = vxor.u32 %v961, 2147483648
    %v964 = vmul.f32 %v962, 1.442695
    %v965 = vpow.pop %v964
    %v966 = vmul.f32 %v963, 1.442695
    %v967 = vpow.pop %v966
    %v968 = vadd.f32 %v965, 1.0
    %v969 = vadd.f32 %v967, 1.0
    %v970 = vrcp.pop %v968
    %v971 = vmul.f32 1.0, %v970
    %v972 = vrcp.pop %v969
    %v973 = vmul.f32 1.0, %v972
    %v974 = vtanh.pop %v960
    %v975 = vtanh.pop %v961
    %v976 = vmul.f32 %v971, %v776
    %v977 = vmul.f32 %v973, %v777
    %980 = vrot.lane.b32.xlu0 %v974, 64
    %v981 = vpop.permute.xlu0 %980
    %982 = vrot.lane.b32.xlu0 %v975, 64
    %v983 = vpop.permute.xlu0 %982
    %v986 = vmul.f32 %v971, %v981
    %v987 = vmul.f32 %v973, %v983
    %990 = vrot.lane.b32.xlu0 %v986, 32
    %v991 = vpop.permute.xlu0 %990
    %992 = vrot.lane.b32.xlu0 %v987, 32
    %v993 = vpop.permute.xlu0 %992
    %v996 = vadd.f32 %v976, %v991
    %v997 = vadd.f32 %v977, %v993
    %v998 = vtanh.pop %v996
    %v999 = vtanh.pop %v997
    %1002 = vrot.lane.b32.xlu0 %v998, 64
    %v1003 = vpop.permute.xlu0 %1002
    %1004 = vrot.lane.b32.xlu0 %v999, 64
    %v1005 = vpop.permute.xlu0 %1004
    %v1008 = vmul.f32 %v971, %v1003
    %v1009 = vmul.f32 %v973, %v1005
    %s1010 = scalar_lea.vmem [#allocation3], 80
    %v1011 = vld [vmem:[%s1010] sm:$0xff]
    %v1012 = vld [vmem:[%s1010 + $0x8] sm:$0xff]
    %v1013 = vpack.c.bf16 %v890, %v889
    %1015 = vrot.lane.b32.xlu0 %v1013, 32
    %v1016 = vpop.permute.xlu0 %1015
    %v1018 = vsel %vm175, %v1016, 0
    %1020 = vmatprep.subr.bf16.mxu0 0
    %1021 = vmatpush1.bf16.msra.mxu0 %v576
    %1022 = vmatprep.subr.bf16.mxu0 0
    %1023 = vmatpush1.bf16.msra.mxu0 %v577
    %1024 = vmatprep.subr.bf16.mxu0 0
    %1025 = vmatpush1.bf16.msra.mxu0 0
    %1026 = vmatprep.subr.bf16.mxu0 0
    %1027 = vmatpush1.bf16.msra.mxu0 0
    %1028 = vmatprep.subr.bf16.mxu0 0
    %1029 = vmatpush1.bf16.msra.mxu0 0
    %1030 = vmatprep.subr.bf16.mxu0 0
    %1031 = vmatpush1.bf16.msra.mxu0 0
    %1032 = vmatprep.subr.bf16.mxu0 0
    %1033 = vmatpush1.bf16.msra.mxu0 0
    %1034 = vmatprep.subr.bf16.mxu0 0
    %1035 = vmatpush1.bf16.msra.mxu0 0
    %1036 = vmatprep.subr.bf16.mxu0 0
    %1037 = vmatpush1.bf16.msra.mxu0 0
    %1038 = vmatprep.subr.bf16.mxu0 0
    %1039 = vmatpush1.bf16.msra.mxu0 0
    %1040 = vmatprep.subr.bf16.mxu0 0
    %1041 = vmatpush1.bf16.msra.mxu0 0
    %1042 = vmatprep.subr.bf16.mxu0 0
    %1043 = vmatpush1.bf16.msra.mxu0 0
    %1044 = vmatprep.subr.bf16.mxu0 0
    %1045 = vmatpush1.bf16.msra.mxu0 0
    %1046 = vmatprep.subr.bf16.mxu0 0
    %1047 = vmatpush1.bf16.msra.mxu0 0
    %1048 = vmatprep.subr.bf16.mxu0 0
    %1049 = vmatpush1.bf16.msra.mxu0 0
    %1050 = vmatprep.subr.bf16.mxu0 0
    %1051 = vmatpush1.bf16.msra.mxu0 0
    %1052 = vmatprep.mubr.bf16.mxu0 0
    %1053 = vmatmul.mubr.bf16.gmra.mrb[0].mxu0 %v1018
    %v1054 = vpop.f32.mrb[0].mxu0
    %v1055 = vadd.f32 0.0, %v1054
    %v1056 = vpop.f32.mrb[0].mxu0
    %v1057 = vpop.f32.mrb[0].mxu0
    %v1058 = vadd.f32 0.0, %v1057
    %v1059 = vpop.f32.mrb[0].mxu0
    %1060 = vdwg.mxu0
    %v1061 = vadd.f32 %v1011, %v1055
    %v1062 = vadd.f32 %v1012, %v1058
    %v1063 = vxor.u32 %v1061, 2147483648
    %v1064 = vxor.u32 %v1062, 2147483648
    %v1065 = vmul.f32 %v1063, 1.442695
    %v1066 = vpow.pop %v1065
    %v1067 = vmul.f32 %v1064, 1.442695
    %v1068 = vpow.pop %v1067
    %v1069 = vadd.f32 %v1066, 1.0
    %v1070 = vadd.f32 %v1068, 1.0
    %v1071 = vrcp.pop %v1069
    %v1072 = vmul.f32 1.0, %v1071
    %v1073 = vrcp.pop %v1070
    %v1074 = vmul.f32 1.0, %v1073
    %v1075 = vtanh.pop %v1061
    %v1076 = vtanh.pop %v1062
    %v1077 = vmul.f32 %v1072, %v877
    %v1078 = vmul.f32 %v1074, %v878
    %1081 = vrot.lane.b32.xlu0 %v1075, 64
    %v1082 = vpop.permute.xlu0 %1081
    %1083 = vrot.lane.b32.xlu0 %v1076, 64
    %v1084 = vpop.permute.xlu0 %1083
    %v1087 = vmul.f32 %v1072, %v1082
    %v1088 = vmul.f32 %v1074, %v1084
    %1091 = vrot.lane.b32.xlu0 %v1087, 32
    %v1092 = vpop.permute.xlu0 %1091
    %1093 = vrot.lane.b32.xlu0 %v1088, 32
    %v1094 = vpop.permute.xlu0 %1093
    %v1097 = vadd.f32 %v1077, %v1092
    %v1098 = vadd.f32 %v1078, %v1094
    %v1099 = vtanh.pop %v1097
    %v1100 = vtanh.pop %v1098
    %1103 = vrot.lane.b32.xlu0 %v1099, 64
    %v1104 = vpop.permute.xlu0 %1103
    %1105 = vrot.lane.b32.xlu0 %v1100, 64
    %v1106 = vpop.permute.xlu0 %1105
    %v1109 = vmul.f32 %v1072, %v1104
    %v1110 = vmul.f32 %v1074, %v1106
    %v1111 = vadd.f32 %v1008, %v1109
    %v1112 = vadd.f32 %v1009, %v1110
    %1115 = vrot.lane.b32.xlu0 %v1111, 32
    %v1116 = vpop.permute.xlu0 %1115
    %1117 = vrot.lane.b32.xlu0 %v1112, 32
    %v1118 = vpop.permute.xlu0 %1117
    %v1121 = vsel %vm175, %v1116, 0.0
    %1122 = vadd.xlane.f32.xlu0 %v1121
    %v1123 = vpop.xlane.xlu0 %1122
    %v1124 = vsel %vm175, %v1118, 0.0
    %1125 = vadd.xlane.f32.xlu0 %v1124
    %v1126 = vpop.xlane.xlu0 %1125
    %v1127 = vadd.f32 %v907, %v1123
    %v1128 = vadd.f32 %v908, %v1126
    %s1129 = scalar_lea.vmem [#allocation2], 48
    %v1130 = vld [vmem:[%s1129] sm:$0xff]
    %v1131 = vld [vmem:[%s1129 + $0x8] sm:$0xff]
    %v1132 = vpack.c.bf16 %v1009, %v1008
    %1134 = vrot.lane.b32.xlu0 %v1132, 32
    %v1135 = vpop.permute.xlu0 %1134
    %v1137 = vsel %vm175, %v1135, 0
    %1139 = vmatprep.subr.bf16.mxu0 0
    %1140 = vmatpush1.bf16.msra.mxu0 %v467
    %1141 = vmatprep.subr.bf16.mxu0 0
    %1142 = vmatpush1.bf16.msra.mxu0 %v468
    %1143 = vmatprep.subr.bf16.mxu0 0
    %1144 = vmatpush1.bf16.msra.mxu0 0
    %1145 = vmatprep.subr.bf16.mxu0 0
    %1146 = vmatpush1.bf16.msra.mxu0 0
    %1147 = vmatprep.subr.bf16.mxu0 0
    %1148 = vmatpush1.bf16.msra.mxu0 0
    %1149 = vmatprep.subr.bf16.mxu0 0
    %1150 = vmatpush1.bf16.msra.mxu0 0
    %1151 = vmatprep.subr.bf16.mxu0 0
    %1152 = vmatpush1.bf16.msra.mxu0 0
    %1153 = vmatprep.subr.bf16.mxu0 0
    %1154 = vmatpush1.bf16.msra.mxu0 0
    %1155 = vmatprep.subr.bf16.mxu0 0
    %1156 = vmatpush1.bf16.msra.mxu0 0
    %1157 = vmatprep.subr.bf16.mxu0 0
    %1158 = vmatpush1.bf16.msra.mxu0 0
    %1159 = vmatprep.subr.bf16.mxu0 0
    %1160 = vmatpush1.bf16.msra.mxu0 0
    %1161 = vmatprep.subr.bf16.mxu0 0
    %1162 = vmatpush1.bf16.msra.mxu0 0
    %1163 = vmatprep.subr.bf16.mxu0 0
    %1164 = vmatpush1.bf16.msra.mxu0 0
    %1165 = vmatprep.subr.bf16.mxu0 0
    %1166 = vmatpush1.bf16.msra.mxu0 0
    %1167 = vmatprep.subr.bf16.mxu0 0
    %1168 = vmatpush1.bf16.msra.mxu0 0
    %1169 = vmatprep.subr.bf16.mxu0 0
    %1170 = vmatpush1.bf16.msra.mxu0 0
    %1171 = vmatprep.mubr.bf16.mxu0 0
    %1172 = vmatmul.mubr.bf16.gmra.mrb[0].mxu0 %v1137
    %v1173 = vpop.f32.mrb[0].mxu0
    %v1174 = vadd.f32 0.0, %v1173
    %v1175 = vpop.f32.mrb[0].mxu0
    %v1176 = vpop.f32.mrb[0].mxu0
    %v1177 = vadd.f32 0.0, %v1176
    %v1178 = vpop.f32.mrb[0].mxu0
    %1179 = vdwg.mxu0
    %v1180 = vadd.f32 %v1130, %v1174
    %v1181 = vadd.f32 %v1131, %v1177
    %v1182 = vxor.u32 %v1180, 2147483648
    %v1183 = vxor.u32 %v1181, 2147483648
    %v1184 = vmul.f32 %v1182, 1.442695
    %v1185 = vpow.pop %v1184
    %v1186 = vmul.f32 %v1183, 1.442695
    %v1187 = vpow.pop %v1186
    %v1188 = vadd.f32 %v1185, 1.0
    %v1189 = vadd.f32 %v1187, 1.0
    %v1190 = vrcp.pop %v1188
    %v1191 = vmul.f32 1.0, %v1190
    %v1192 = vrcp.pop %v1189
    %v1193 = vmul.f32 1.0, %v1192
    %v1194 = vtanh.pop %v1180
    %v1195 = vtanh.pop %v1181
    %v1196 = vmul.f32 %v1191, %v996
    %v1197 = vmul.f32 %v1193, %v997
    %1200 = vrot.lane.b32.xlu0 %v1194, 64
    %v1201 = vpop.permute.xlu0 %1200
    %1202 = vrot.lane.b32.xlu0 %v1195, 64
    %v1203 = vpop.permute.xlu0 %1202
    %v1206 = vmul.f32 %v1191, %v1201
    %v1207 = vmul.f32 %v1193, %v1203
    %1210 = vrot.lane.b32.xlu0 %v1206, 32
    %v1211 = vpop.permute.xlu0 %1210
    %1212 = vrot.lane.b32.xlu0 %v1207, 32
    %v1213 = vpop.permute.xlu0 %1212
    %v1216 = vadd.f32 %v1196, %v1211
    %v1217 = vadd.f32 %v1197, %v1213
    %v1218 = vtanh.pop %v1216
    %v1219 = vtanh.pop %v1217
    %1222 = vrot.lane.b32.xlu0 %v1218, 64
    %v1223 = vpop.permute.xlu0 %1222
    %1224 = vrot.lane.b32.xlu0 %v1219, 64
    %v1225 = vpop.permute.xlu0 %1224
    %v1228 = vmul.f32 %v1191, %v1223
    %v1229 = vmul.f32 %v1193, %v1225
    %s1230 = scalar_lea.vmem [#allocation3], 64
    %v1231 = vld [vmem:[%s1230] sm:$0xff]
    %v1232 = vld [vmem:[%s1230 + $0x8] sm:$0xff]
    %v1233 = vpack.c.bf16 %v1110, %v1109
    %1235 = vrot.lane.b32.xlu0 %v1233, 32
    %v1236 = vpop.permute.xlu0 %1235
    %v1238 = vsel %vm175, %v1236, 0
    %1240 = vmatprep.subr.bf16.mxu0 0
    %1241 = vmatpush1.bf16.msra.mxu0 %v576
    %1242 = vmatprep.subr.bf16.mxu0 0
    %1243 = vmatpush1.bf16.msra.mxu0 %v577
    %1244 = vmatprep.subr.bf16.mxu0 0
    %1245 = vmatpush1.bf16.msra.mxu0 0
    %1246 = vmatprep.subr.bf16.mxu0 0
    %1247 = vmatpush1.bf16.msra.mxu0 0
    %1248 = vmatprep.subr.bf16.mxu0 0
    %1249 = vmatpush1.bf16.msra.mxu0 0
    %1250 = vmatprep.subr.bf16.mxu0 0
    %1251 = vmatpush1.bf16.msra.mxu0 0
    %1252 = vmatprep.subr.bf16.mxu0 0
    %1253 = vmatpush1.bf16.msra.mxu0 0
    %1254 = vmatprep.subr.bf16.mxu0 0
    %1255 = vmatpush1.bf16.msra.mxu0 0
    %1256 = vmatprep.subr.bf16.mxu0 0
    %1257 = vmatpush1.bf16.msra.mxu0 0
    %1258 = vmatprep.subr.bf16.mxu0 0
    %1259 = vmatpush1.bf16.msra.mxu0 0
    %1260 = vmatprep.subr.bf16.mxu0 0
    %1261 = vmatpush1.bf16.msra.mxu0 0
    %1262 = vmatprep.subr.bf16.mxu0 0
    %1263 = vmatpush1.bf16.msra.mxu0 0
    %1264 = vmatprep.subr.bf16.mxu0 0
    %1265 = vmatpush1.bf16.msra.mxu0 0
    %1266 = vmatprep.subr.bf16.mxu0 0
    %1267 = vmatpush1.bf16.msra.mxu0 0
    %1268 = vmatprep.subr.bf16.mxu0 0
    %1269 = vmatpush1.bf16.msra.mxu0 0
    %1270 = vmatprep.subr.bf16.mxu0 0
    %1271 = vmatpush1.bf16.msra.mxu0 0
    %1272 = vmatprep.mubr.bf16.mxu0 0
    %1273 = vmatmul.mubr.bf16.gmra.mrb[0].mxu0 %v1238
    %v1274 = vpop.f32.mrb[0].mxu0
    %v1275 = vadd.f32 0.0, %v1274
    %v1276 = vpop.f32.mrb[0].mxu0
    %v1277 = vpop.f32.mrb[0].mxu0
    %v1278 = vadd.f32 0.0, %v1277
    %v1279 = vpop.f32.mrb[0].mxu0
    %1280 = vdwg.mxu0
    %v1281 = vadd.f32 %v1231, %v1275
    %v1282 = vadd.f32 %v1232, %v1278
    %v1283 = vxor.u32 %v1281, 2147483648
    %v1284 = vxor.u32 %v1282, 2147483648
    %v1285 = vmul.f32 %v1283, 1.442695
    %v1286 = vpow.pop %v1285
    %v1287 = vmul.f32 %v1284, 1.442695
    %v1288 = vpow.pop %v1287
    %v1289 = vadd.f32 %v1286, 1.0
    %v1290 = vadd.f32 %v1288, 1.0
    %v1291 = vrcp.pop %v1289
    %v1292 = vmul.f32 1.0, %v1291
    %v1293 = vrcp.pop %v1290
    %v1294 = vmul.f32 1.0, %v1293
    %v1295 = vtanh.pop %v1281
    %v1296 = vtanh.pop %v1282
    %v1297 = vmul.f32 %v1292, %v1097
    %v1298 = vmul.f32 %v1294, %v1098
    %1301 = vrot.lane.b32.xlu0 %v1295, 64
    %v1302 = vpop.permute.xlu0 %1301
    %1303 = vrot.lane.b32.xlu0 %v1296, 64
    %v1304 = vpop.permute.xlu0 %1303
    %v1307 = vmul.f32 %v1292, %v1302
    %v1308 = vmul.f32 %v1294, %v1304
    %1311 = vrot.lane.b32.xlu0 %v1307, 32
    %v1312 = vpop.permute.xlu0 %1311
    %1313 = vrot.lane.b32.xlu0 %v1308, 32
    %v1314 = vpop.permute.xlu0 %1313
    %v1317 = vadd.f32 %v1297, %v1312
    %v1318 = vadd.f32 %v1298, %v1314
    %v1319 = vtanh.pop %v1317
    %v1320 = vtanh.pop %v1318
    %1323 = vrot.lane.b32.xlu0 %v1319, 64
    %v1324 = vpop.permute.xlu0 %1323
    %1325 = vrot.lane.b32.xlu0 %v1320, 64
    %v1326 = vpop.permute.xlu0 %1325
    %v1329 = vmul.f32 %v1292, %v1324
    %v1330 = vmul.f32 %v1294, %v1326
    %v1331 = vadd.f32 %v1228, %v1329
    %v1332 = vadd.f32 %v1229, %v1330
    %1335 = vrot.lane.b32.xlu0 %v1331, 32
    %v1336 = vpop.permute.xlu0 %1335
    %1337 = vrot.lane.b32.xlu0 %v1332, 32
    %v1338 = vpop.permute.xlu0 %1337
    %v1341 = vsel %vm175, %v1336, 0.0
    %1342 = vadd.xlane.f32.xlu0 %v1341
    %v1343 = vpop.xlane.xlu0 %1342
    %v1344 = vsel %vm175, %v1338, 0.0
    %1345 = vadd.xlane.f32.xlu0 %v1344
    %v1346 = vpop.xlane.xlu0 %1345
    %v1347 = vadd.f32 %v1127, %v1343
    %v1348 = vadd.f32 %v1128, %v1346
    %s1349 = scalar_lea.vmem [#allocation2], 64
    %v1350 = vld [vmem:[%s1349] sm:$0xff]
    %v1351 = vld [vmem:[%s1349 + $0x8] sm:$0xff]
    %v1352 = vpack.c.bf16 %v1229, %v1228
    %1354 = vrot.lane.b32.xlu0 %v1352, 32
    %v1355 = vpop.permute.xlu0 %1354
    %v1357 = vsel %vm175, %v1355, 0
    %1359 = vmatprep.subr.bf16.mxu0 0
    %1360 = vmatpush1.bf16.msra.mxu0 %v467
    %1361 = vmatprep.subr.bf16.mxu0 0
    %1362 = vmatpush1.bf16.msra.mxu0 %v468
    %1363 = vmatprep.subr.bf16.mxu0 0
    %1364 = vmatpush1.bf16.msra.mxu0 0
    %1365 = vmatprep.subr.bf16.mxu0 0
    %1366 = vmatpush1.bf16.msra.mxu0 0
    %1367 = vmatprep.subr.bf16.mxu0 0
    %1368 = vmatpush1.bf16.msra.mxu0 0
    %1369 = vmatprep.subr.bf16.mxu0 0
    %1370 = vmatpush1.bf16.msra.mxu0 0
    %1371 = vmatprep.subr.bf16.mxu0 0
    %1372 = vmatpush1.bf16.msra.mxu0 0
    %1373 = vmatprep.subr.bf16.mxu0 0
    %1374 = vmatpush1.bf16.msra.mxu0 0
    %1375 = vmatprep.subr.bf16.mxu0 0
    %1376 = vmatpush1.bf16.msra.mxu0 0
    %1377 = vmatprep.subr.bf16.mxu0 0
    %1378 = vmatpush1.bf16.msra.mxu0 0
    %1379 = vmatprep.subr.bf16.mxu0 0
    %1380 = vmatpush1.bf16.msra.mxu0 0
    %1381 = vmatprep.subr.bf16.mxu0 0
    %1382 = vmatpush1.bf16.msra.mxu0 0
    %1383 = vmatprep.subr.bf16.mxu0 0
    %1384 = vmatpush1.bf16.msra.mxu0 0
    %1385 = vmatprep.subr.bf16.mxu0 0
    %1386 = vmatpush1.bf16.msra.mxu0 0
    %1387 = vmatprep.subr.bf16.mxu0 0
    %1388 = vmatpush1.bf16.msra.mxu0 0
    %1389 = vmatprep.subr.bf16.mxu0 0
    %1390 = vmatpush1.bf16.msra.mxu0 0
    %1391 = vmatprep.mubr.bf16.mxu0 0
    %1392 = vmatmul.mubr.bf16.gmra.mrb[0].mxu0 %v1357
    %v1393 = vpop.f32.mrb[0].mxu0
    %v1394 = vadd.f32 0.0, %v1393
    %v1395 = vpop.f32.mrb[0].mxu0
    %v1396 = vpop.f32.mrb[0].mxu0
    %v1397 = vadd.f32 0.0, %v1396
    %v1398 = vpop.f32.mrb[0].mxu0
    %1399 = vdwg.mxu0
    %v1400 = vadd.f32 %v1350, %v1394
    %v1401 = vadd.f32 %v1351, %v1397
    %v1402 = vxor.u32 %v1400, 2147483648
    %v1403 = vxor.u32 %v1401, 2147483648
    %v1404 = vmul.f32 %v1402, 1.442695
    %v1405 = vpow.pop %v1404
    %v1406 = vmul.f32 %v1403, 1.442695
    %v1407 = vpow.pop %v1406
    %v1408 = vadd.f32 %v1405, 1.0
    %v1409 = vadd.f32 %v1407, 1.0
    %v1410 = vrcp.pop %v1408
    %v1411 = vmul.f32 1.0, %v1410
    %v1412 = vrcp.pop %v1409
    %v1413 = vmul.f32 1.0, %v1412
    %v1414 = vtanh.pop %v1400
    %v1415 = vtanh.pop %v1401
    %v1416 = vmul.f32 %v1411, %v1216
    %v1417 = vmul.f32 %v1413, %v1217
    %1420 = vrot.lane.b32.xlu0 %v1414, 64
    %v1421 = vpop.permute.xlu0 %1420
    %1422 = vrot.lane.b32.xlu0 %v1415, 64
    %v1423 = vpop.permute.xlu0 %1422
    %v1426 = vmul.f32 %v1411, %v1421
    %v1427 = vmul.f32 %v1413, %v1423
    %1430 = vrot.lane.b32.xlu0 %v1426, 32
    %v1431 = vpop.permute.xlu0 %1430
    %1432 = vrot.lane.b32.xlu0 %v1427, 32
    %v1433 = vpop.permute.xlu0 %1432
    %v1436 = vadd.f32 %v1416, %v1431
    %v1437 = vadd.f32 %v1417, %v1433
    %v1438 = vtanh.pop %v1436
    %v1439 = vtanh.pop %v1437
    %1442 = vrot.lane.b32.xlu0 %v1438, 64
    %v1443 = vpop.permute.xlu0 %1442
    %1444 = vrot.lane.b32.xlu0 %v1439, 64
    %v1445 = vpop.permute.xlu0 %1444
    %v1448 = vmul.f32 %v1411, %v1443
    %v1449 = vmul.f32 %v1413, %v1445
    %s1450 = scalar_lea.vmem [#allocation3], 48
    %v1451 = vld [vmem:[%s1450] sm:$0xff]
    %v1452 = vld [vmem:[%s1450 + $0x8] sm:$0xff]
    %v1453 = vpack.c.bf16 %v1330, %v1329
    %1455 = vrot.lane.b32.xlu0 %v1453, 32
    %v1456 = vpop.permute.xlu0 %1455
    %v1458 = vsel %vm175, %v1456, 0
    %1460 = vmatprep.subr.bf16.mxu0 0
    %1461 = vmatpush1.bf16.msra.mxu0 %v576
    %1462 = vmatprep.subr.bf16.mxu0 0
    %1463 = vmatpush1.bf16.msra.mxu0 %v577
    %1464 = vmatprep.subr.bf16.mxu0 0
    %1465 = vmatpush1.bf16.msra.mxu0 0
    %1466 = vmatprep.subr.bf16.mxu0 0
    %1467 = vmatpush1.bf16.msra.mxu0 0
    %1468 = vmatprep.subr.bf16.mxu0 0
    %1469 = vmatpush1.bf16.msra.mxu0 0
    %1470 = vmatprep.subr.bf16.mxu0 0
    %1471 = vmatpush1.bf16.msra.mxu0 0
    %1472 = vmatprep.subr.bf16.mxu0 0
    %1473 = vmatpush1.bf16.msra.mxu0 0
    %1474 = vmatprep.subr.bf16.mxu0 0
    %1475 = vmatpush1.bf16.msra.mxu0 0
    %1476 = vmatprep.subr.bf16.mxu0 0
    %1477 = vmatpush1.bf16.msra.mxu0 0
    %1478 = vmatprep.subr.bf16.mxu0 0
    %1479 = vmatpush1.bf16.msra.mxu0 0
    %1480 = vmatprep.subr.bf16.mxu0 0
    %1481 = vmatpush1.bf16.msra.mxu0 0
    %1482 = vmatprep.subr.bf16.mxu0 0
    %1483 = vmatpush1.bf16.msra.mxu0 0
    %1484 = vmatprep.subr.bf16.mxu0 0
    %1485 = vmatpush1.bf16.msra.mxu0 0
    %1486 = vmatprep.subr.bf16.mxu0 0
    %1487 = vmatpush1.bf16.msra.mxu0 0
    %1488 = vmatprep.subr.bf16.mxu0 0
    %1489 = vmatpush1.bf16.msra.mxu0 0
    %1490 = vmatprep.subr.bf16.mxu0 0
    %1491 = vmatpush1.bf16.msra.mxu0 0
    %1492 = vmatprep.mubr.bf16.mxu0 0
    %1493 = vmatmul.mubr.bf16.gmra.mrb[0].mxu0 %v1458
    %v1494 = vpop.f32.mrb[0].mxu0
    %v1495 = vadd.f32 0.0, %v1494
    %v1496 = vpop.f32.mrb[0].mxu0
    %v1497 = vpop.f32.mrb[0].mxu0
    %v1498 = vadd.f32 0.0, %v1497
    %v1499 = vpop.f32.mrb[0].mxu0
    %1500 = vdwg.mxu0
    %v1501 = vadd.f32 %v1451, %v1495
    %v1502 = vadd.f32 %v1452, %v1498
    %v1503 = vxor.u32 %v1501, 2147483648
    %v1504 = vxor.u32 %v1502, 2147483648
    %v1505 = vmul.f32 %v1503, 1.442695
    %v1506 = vpow.pop %v1505
    %v1507 = vmul.f32 %v1504, 1.442695
    %v1508 = vpow.pop %v1507
    %v1509 = vadd.f32 %v1506, 1.0
    %v1510 = vadd.f32 %v1508, 1.0
    %v1511 = vrcp.pop %v1509
    %v1512 = vmul.f32 1.0, %v1511
    %v1513 = vrcp.pop %v1510
    %v1514 = vmul.f32 1.0, %v1513
    %v1515 = vtanh.pop %v1501
    %v1516 = vtanh.pop %v1502
    %v1517 = vmul.f32 %v1512, %v1317
    %v1518 = vmul.f32 %v1514, %v1318
    %1521 = vrot.lane.b32.xlu0 %v1515, 64
    %v1522 = vpop.permute.xlu0 %1521
    %1523 = vrot.lane.b32.xlu0 %v1516, 64
    %v1524 = vpop.permute.xlu0 %1523
    %v1527 = vmul.f32 %v1512, %v1522
    %v1528 = vmul.f32 %v1514, %v1524
    %1531 = vrot.lane.b32.xlu0 %v1527, 32
    %v1532 = vpop.permute.xlu0 %1531
    %1533 = vrot.lane.b32.xlu0 %v1528, 32
    %v1534 = vpop.permute.xlu0 %1533
    %v1537 = vadd.f32 %v1517, %v1532
    %v1538 = vadd.f32 %v1518, %v1534
    %v1539 = vtanh.pop %v1537
    %v1540 = vtanh.pop %v1538
    %1543 = vrot.lane.b32.xlu0 %v1539, 64
    %v1544 = vpop.permute.xlu0 %1543
    %1545 = vrot.lane.b32.xlu0 %v1540, 64
    %v1546 = vpop.permute.xlu0 %1545
    %v1549 = vmul.f32 %v1512, %v1544
    %v1550 = vmul.f32 %v1514, %v1546
    %v1551 = vadd.f32 %v1448, %v1549
    %v1552 = vadd.f32 %v1449, %v1550
    %1555 = vrot.lane.b32.xlu0 %v1551, 32
    %v1556 = vpop.permute.xlu0 %1555
    %1557 = vrot.lane.b32.xlu0 %v1552, 32
    %v1558 = vpop.permute.xlu0 %1557
    %v1561 = vsel %vm175, %v1556, 0.0
    %1562 = vadd.xlane.f32.xlu0 %v1561
    %v1563 = vpop.xlane.xlu0 %1562
    %v1564 = vsel %vm175, %v1558, 0.0
    %1565 = vadd.xlane.f32.xlu0 %v1564
    %v1566 = vpop.xlane.xlu0 %1565
    %v1567 = vadd.f32 %v1347, %v1563
    %v1568 = vadd.f32 %v1348, %v1566
    %s1569 = scalar_lea.vmem [#allocation2], 80
    %v1570 = vld [vmem:[%s1569] sm:$0xff]
    %v1571 = vld [vmem:[%s1569 + $0x8] sm:$0xff]
    %v1572 = vpack.c.bf16 %v1449, %v1448
    %1574 = vrot.lane.b32.xlu0 %v1572, 32
    %v1575 = vpop.permute.xlu0 %1574
    %v1577 = vsel %vm175, %v1575, 0
    %1579 = vmatprep.subr.bf16.mxu0 0
    %1580 = vmatpush1.bf16.msra.mxu0 %v467
    %1581 = vmatprep.subr.bf16.mxu0 0
    %1582 = vmatpush1.bf16.msra.mxu0 %v468
    %1583 = vmatprep.subr.bf16.mxu0 0
    %1584 = vmatpush1.bf16.msra.mxu0 0
    %1585 = vmatprep.subr.bf16.mxu0 0
    %1586 = vmatpush1.bf16.msra.mxu0 0
    %1587 = vmatprep.subr.bf16.mxu0 0
    %1588 = vmatpush1.bf16.msra.mxu0 0
    %1589 = vmatprep.subr.bf16.mxu0 0
    %1590 = vmatpush1.bf16.msra.mxu0 0
    %1591 = vmatprep.subr.bf16.mxu0 0
    %1592 = vmatpush1.bf16.msra.mxu0 0
    %1593 = vmatprep.subr.bf16.mxu0 0
    %1594 = vmatpush1.bf16.msra.mxu0 0
    %1595 = vmatprep.subr.bf16.mxu0 0
    %1596 = vmatpush1.bf16.msra.mxu0 0
    %1597 = vmatprep.subr.bf16.mxu0 0
    %1598 = vmatpush1.bf16.msra.mxu0 0
    %1599 = vmatprep.subr.bf16.mxu0 0
    %1600 = vmatpush1.bf16.msra.mxu0 0
    %1601 = vmatprep.subr.bf16.mxu0 0
    %1602 = vmatpush1.bf16.msra.mxu0 0
    %1603 = vmatprep.subr.bf16.mxu0 0
    %1604 = vmatpush1.bf16.msra.mxu0 0
    %1605 = vmatprep.subr.bf16.mxu0 0
    %1606 = vmatpush1.bf16.msra.mxu0 0
    %1607 = vmatprep.subr.bf16.mxu0 0
    %1608 = vmatpush1.bf16.msra.mxu0 0
    %1609 = vmatprep.subr.bf16.mxu0 0
    %1610 = vmatpush1.bf16.msra.mxu0 0
    %1611 = vmatprep.mubr.bf16.mxu0 0
    %1612 = vmatmul.mubr.bf16.gmra.mrb[0].mxu0 %v1577
    %v1613 = vpop.f32.mrb[0].mxu0
    %v1614 = vadd.f32 0.0, %v1613
    %v1615 = vpop.f32.mrb[0].mxu0
    %v1616 = vpop.f32.mrb[0].mxu0
    %v1617 = vadd.f32 0.0, %v1616
    %v1618 = vpop.f32.mrb[0].mxu0
    %1619 = vdwg.mxu0
    %v1620 = vadd.f32 %v1570, %v1614
    %v1621 = vadd.f32 %v1571, %v1617
    %v1622 = vxor.u32 %v1620, 2147483648
    %v1623 = vxor.u32 %v1621, 2147483648
    %v1624 = vmul.f32 %v1622, 1.442695
    %v1625 = vpow.pop %v1624
    %v1626 = vmul.f32 %v1623, 1.442695
    %v1627 = vpow.pop %v1626
    %v1628 = vadd.f32 %v1625, 1.0
    %v1629 = vadd.f32 %v1627, 1.0
    %v1630 = vrcp.pop %v1628
    %v1631 = vmul.f32 1.0, %v1630
    %v1632 = vrcp.pop %v1629
    %v1633 = vmul.f32 1.0, %v1632
    %v1634 = vtanh.pop %v1620
    %v1635 = vtanh.pop %v1621
    %v1636 = vmul.f32 %v1631, %v1436
    %v1637 = vmul.f32 %v1633, %v1437
    %1640 = vrot.lane.b32.xlu0 %v1634, 64
    %v1641 = vpop.permute.xlu0 %1640
    %1642 = vrot.lane.b32.xlu0 %v1635, 64
    %v1643 = vpop.permute.xlu0 %1642
    %v1646 = vmul.f32 %v1631, %v1641
    %v1647 = vmul.f32 %v1633, %v1643
    %1650 = vrot.lane.b32.xlu0 %v1646, 32
    %v1651 = vpop.permute.xlu0 %1650
    %1652 = vrot.lane.b32.xlu0 %v1647, 32
    %v1653 = vpop.permute.xlu0 %1652
    %v1656 = vadd.f32 %v1636, %v1651
    %v1657 = vadd.f32 %v1637, %v1653
    %v1658 = vtanh.pop %v1656
    %v1659 = vtanh.pop %v1657
    %1662 = vrot.lane.b32.xlu0 %v1658, 64
    %v1663 = vpop.permute.xlu0 %1662
    %1664 = vrot.lane.b32.xlu0 %v1659, 64
    %v1665 = vpop.permute.xlu0 %1664
    %v1668 = vmul.f32 %v1631, %v1663
    %v1669 = vmul.f32 %v1633, %v1665
    %s1670 = scalar_lea.vmem [#allocation3], 32
    %v1671 = vld [vmem:[%s1670] sm:$0xff]
    %v1672 = vld [vmem:[%s1670 + $0x8] sm:$0xff]
    %v1673 = vpack.c.bf16 %v1550, %v1549
    %1675 = vrot.lane.b32.xlu0 %v1673, 32
    %v1676 = vpop.permute.xlu0 %1675
    %v1678 = vsel %vm175, %v1676, 0
    %1680 = vmatprep.subr.bf16.mxu0 0
    %1681 = vmatpush1.bf16.msra.mxu0 %v576
    %1682 = vmatprep.subr.bf16.mxu0 0
    %1683 = vmatpush1.bf16.msra.mxu0 %v577
    %1684 = vmatprep.subr.bf16.mxu0 0
    %1685 = vmatpush1.bf16.msra.mxu0 0
    %1686 = vmatprep.subr.bf16.mxu0 0
    %1687 = vmatpush1.bf16.msra.mxu0 0
    %1688 = vmatprep.subr.bf16.mxu0 0
    %1689 = vmatpush1.bf16.msra.mxu0 0
    %1690 = vmatprep.subr.bf16.mxu0 0
    %1691 = vmatpush1.bf16.msra.mxu0 0
    %1692 = vmatprep.subr.bf16.mxu0 0
    %1693 = vmatpush1.bf16.msra.mxu0 0
    %1694 = vmatprep.subr.bf16.mxu0 0
    %1695 = vmatpush1.bf16.msra.mxu0 0
    %1696 = vmatprep.subr.bf16.mxu0 0
    %1697 = vmatpush1.bf16.msra.mxu0 0
    %1698 = vmatprep.subr.bf16.mxu0 0
    %1699 = vmatpush1.bf16.msra.mxu0 0
    %1700 = vmatprep.subr.bf16.mxu0 0
    %1701 = vmatpush1.bf16.msra.mxu0 0
    %1702 = vmatprep.subr.bf16.mxu0 0
    %1703 = vmatpush1.bf16.msra.mxu0 0
    %1704 = vmatprep.subr.bf16.mxu0 0
    %1705 = vmatpush1.bf16.msra.mxu0 0
    %1706 = vmatprep.subr.bf16.mxu0 0
    %1707 = vmatpush1.bf16.msra.mxu0 0
    %1708 = vmatprep.subr.bf16.mxu0 0
    %1709 = vmatpush1.bf16.msra.mxu0 0
    %1710 = vmatprep.subr.bf16.mxu0 0
    %1711 = vmatpush1.bf16.msra.mxu0 0
    %1712 = vmatprep.mubr.bf16.mxu0 0
    %1713 = vmatmul.mubr.bf16.gmra.mrb[0].mxu0 %v1678
    %v1714 = vpop.f32.mrb[0].mxu0
    %v1715 = vadd.f32 0.0, %v1714
    %v1716 = vpop.f32.mrb[0].mxu0
    %v1717 = vpop.f32.mrb[0].mxu0
    %v1718 = vadd.f32 0.0, %v1717
    %v1719 = vpop.f32.mrb[0].mxu0
    %1720 = vdwg.mxu0
    %v1721 = vadd.f32 %v1671, %v1715
    %v1722 = vadd.f32 %v1672, %v1718
    %v1723 = vxor.u32 %v1721, 2147483648
    %v1724 = vxor.u32 %v1722, 2147483648
    %v1725 = vmul.f32 %v1723, 1.442695
    %v1726 = vpow.pop %v1725
    %v1727 = vmul.f32 %v1724, 1.442695
    %v1728 = vpow.pop %v1727
    %v1729 = vadd.f32 %v1726, 1.0
    %v1730 = vadd.f32 %v1728, 1.0
    %v1731 = vrcp.pop %v1729
    %v1732 = vmul.f32 1.0, %v1731
    %v1733 = vrcp.pop %v1730
    %v1734 = vmul.f32 1.0, %v1733
    %v1735 = vtanh.pop %v1721
    %v1736 = vtanh.pop %v1722
    %v1737 = vmul.f32 %v1732, %v1537
    %v1738 = vmul.f32 %v1734, %v1538
    %1741 = vrot.lane.b32.xlu0 %v1735, 64
    %v1742 = vpop.permute.xlu0 %1741
    %1743 = vrot.lane.b32.xlu0 %v1736, 64
    %v1744 = vpop.permute.xlu0 %1743
    %v1747 = vmul.f32 %v1732, %v1742
    %v1748 = vmul.f32 %v1734, %v1744
    %1751 = vrot.lane.b32.xlu0 %v1747, 32
    %v1752 = vpop.permute.xlu0 %1751
    %1753 = vrot.lane.b32.xlu0 %v1748, 32
    %v1754 = vpop.permute.xlu0 %1753
    %v1757 = vadd.f32 %v1737, %v1752
    %v1758 = vadd.f32 %v1738, %v1754
    %v1759 = vtanh.pop %v1757
    %v1760 = vtanh.pop %v1758
    %1763 = vrot.lane.b32.xlu0 %v1759, 64
    %v1764 = vpop.permute.xlu0 %1763
    %1765 = vrot.lane.b32.xlu0 %v1760, 64
    %v1766 = vpop.permute.xlu0 %1765
    %v1769 = vmul.f32 %v1732, %v1764
    %v1770 = vmul.f32 %v1734, %v1766
    %v1771 = vadd.f32 %v1668, %v1769
    %v1772 = vadd.f32 %v1669, %v1770
    %1775 = vrot.lane.b32.xlu0 %v1771, 32
    %v1776 = vpop.permute.xlu0 %1775
    %1777 = vrot.lane.b32.xlu0 %v1772, 32
    %v1778 = vpop.permute.xlu0 %1777
    %v1781 = vsel %vm175, %v1776, 0.0
    %1782 = vadd.xlane.f32.xlu0 %v1781
    %v1783 = vpop.xlane.xlu0 %1782
    %v1784 = vsel %vm175, %v1778, 0.0
    %1785 = vadd.xlane.f32.xlu0 %v1784
    %v1786 = vpop.xlane.xlu0 %1785
    %v1787 = vadd.f32 %v1567, %v1783
    %v1788 = vadd.f32 %v1568, %v1786
    %s1789 = scalar_lea.vmem [#allocation2], 96
    %v1790 = vld [vmem:[%s1789] sm:$0xff]
    %v1791 = vld [vmem:[%s1789 + $0x8] sm:$0xff]
    %v1792 = vpack.c.bf16 %v1669, %v1668
    %1794 = vrot.lane.b32.xlu0 %v1792, 32
    %v1795 = vpop.permute.xlu0 %1794
    %v1797 = vsel %vm175, %v1795, 0
    %1799 = vmatprep.subr.bf16.mxu0 0
    %1800 = vmatpush1.bf16.msra.mxu0 %v467
    %1801 = vmatprep.subr.bf16.mxu0 0
    %1802 = vmatpush1.bf16.msra.mxu0 %v468
    %1803 = vmatprep.subr.bf16.mxu0 0
    %1804 = vmatpush1.bf16.msra.mxu0 0
    %1805 = vmatprep.subr.bf16.mxu0 0
    %1806 = vmatpush1.bf16.msra.mxu0 0
    %1807 = vmatprep.subr.bf16.mxu0 0
    %1808 = vmatpush1.bf16.msra.mxu0 0
    %1809 = vmatprep.subr.bf16.mxu0 0
    %1810 = vmatpush1.bf16.msra.mxu0 0
    %1811 = vmatprep.subr.bf16.mxu0 0
    %1812 = vmatpush1.bf16.msra.mxu0 0
    %1813 = vmatprep.subr.bf16.mxu0 0
    %1814 = vmatpush1.bf16.msra.mxu0 0
    %1815 = vmatprep.subr.bf16.mxu0 0
    %1816 = vmatpush1.bf16.msra.mxu0 0
    %1817 = vmatprep.subr.bf16.mxu0 0
    %1818 = vmatpush1.bf16.msra.mxu0 0
    %1819 = vmatprep.subr.bf16.mxu0 0
    %1820 = vmatpush1.bf16.msra.mxu0 0
    %1821 = vmatprep.subr.bf16.mxu0 0
    %1822 = vmatpush1.bf16.msra.mxu0 0
    %1823 = vmatprep.subr.bf16.mxu0 0
    %1824 = vmatpush1.bf16.msra.mxu0 0
    %1825 = vmatprep.subr.bf16.mxu0 0
    %1826 = vmatpush1.bf16.msra.mxu0 0
    %1827 = vmatprep.subr.bf16.mxu0 0
    %1828 = vmatpush1.bf16.msra.mxu0 0
    %1829 = vmatprep.subr.bf16.mxu0 0
    %1830 = vmatpush1.bf16.msra.mxu0 0
    %1831 = vmatprep.mubr.bf16.mxu0 0
    %1832 = vmatmul.mubr.bf16.gmra.mrb[0].mxu0 %v1797
    %v1833 = vpop.f32.mrb[0].mxu0
    %v1834 = vadd.f32 0.0, %v1833
    %v1835 = vpop.f32.mrb[0].mxu0
    %v1836 = vpop.f32.mrb[0].mxu0
    %v1837 = vadd.f32 0.0, %v1836
    %v1838 = vpop.f32.mrb[0].mxu0
    %1839 = vdwg.mxu0
    %v1840 = vadd.f32 %v1790, %v1834
    %v1841 = vadd.f32 %v1791, %v1837
    %v1842 = vxor.u32 %v1840, 2147483648
    %v1843 = vxor.u32 %v1841, 2147483648
    %v1844 = vmul.f32 %v1842, 1.442695
    %v1845 = vpow.pop %v1844
    %v1846 = vmul.f32 %v1843, 1.442695
    %v1847 = vpow.pop %v1846
    %v1848 = vadd.f32 %v1845, 1.0
    %v1849 = vadd.f32 %v1847, 1.0
    %v1850 = vrcp.pop %v1848
    %v1851 = vmul.f32 1.0, %v1850
    %v1852 = vrcp.pop %v1849
    %v1853 = vmul.f32 1.0, %v1852
    %v1854 = vtanh.pop %v1840
    %v1855 = vtanh.pop %v1841
    %v1856 = vmul.f32 %v1851, %v1656
    %v1857 = vmul.f32 %v1853, %v1657
    %1860 = vrot.lane.b32.xlu0 %v1854, 64
    %v1861 = vpop.permute.xlu0 %1860
    %1862 = vrot.lane.b32.xlu0 %v1855, 64
    %v1863 = vpop.permute.xlu0 %1862
    %v1866 = vmul.f32 %v1851, %v1861
    %v1867 = vmul.f32 %v1853, %v1863
    %1870 = vrot.lane.b32.xlu0 %v1866, 32
    %v1871 = vpop.permute.xlu0 %1870
    %1872 = vrot.lane.b32.xlu0 %v1867, 32
    %v1873 = vpop.permute.xlu0 %1872
    %v1876 = vadd.f32 %v1856, %v1871
    %v1877 = vadd.f32 %v1857, %v1873
    %v1878 = vtanh.pop %v1876
    %v1879 = vtanh.pop %v1877
    %1882 = vrot.lane.b32.xlu0 %v1878, 64
    %v1883 = vpop.permute.xlu0 %1882
    %1884 = vrot.lane.b32.xlu0 %v1879, 64
    %v1885 = vpop.permute.xlu0 %1884
    %v1888 = vmul.f32 %v1851, %v1883
    %v1889 = vmul.f32 %v1853, %v1885
    %s1890 = scalar_lea.vmem [#allocation3], 16
    %v1891 = vld [vmem:[%s1890] sm:$0xff]
    %v1892 = vld [vmem:[%s1890 + $0x8] sm:$0xff]
    %v1893 = vpack.c.bf16 %v1770, %v1769
    %1895 = vrot.lane.b32.xlu0 %v1893, 32
    %v1896 = vpop.permute.xlu0 %1895
    %v1898 = vsel %vm175, %v1896, 0
    %1900 = vmatprep.subr.bf16.mxu0 0
    %1901 = vmatpush1.bf16.msra.mxu0 %v576
    %1902 = vmatprep.subr.bf16.mxu0 0
    %1903 = vmatpush1.bf16.msra.mxu0 %v577
    %1904 = vmatprep.subr.bf16.mxu0 0
    %1905 = vmatpush1.bf16.msra.mxu0 0
    %1906 = vmatprep.subr.bf16.mxu0 0
    %1907 = vmatpush1.bf16.msra.mxu0 0
    %1908 = vmatprep.subr.bf16.mxu0 0
    %1909 = vmatpush1.bf16.msra.mxu0 0
    %1910 = vmatprep.subr.bf16.mxu0 0
    %1911 = vmatpush1.bf16.msra.mxu0 0
    %1912 = vmatprep.subr.bf16.mxu0 0
    %1913 = vmatpush1.bf16.msra.mxu0 0
    %1914 = vmatprep.subr.bf16.mxu0 0
    %1915 = vmatpush1.bf16.msra.mxu0 0
    %1916 = vmatprep.subr.bf16.mxu0 0
    %1917 = vmatpush1.bf16.msra.mxu0 0
    %1918 = vmatprep.subr.bf16.mxu0 0
    %1919 = vmatpush1.bf16.msra.mxu0 0
    %1920 = vmatprep.subr.bf16.mxu0 0
    %1921 = vmatpush1.bf16.msra.mxu0 0
    %1922 = vmatprep.subr.bf16.mxu0 0
    %1923 = vmatpush1.bf16.msra.mxu0 0
    %1924 = vmatprep.subr.bf16.mxu0 0
    %1925 = vmatpush1.bf16.msra.mxu0 0
    %1926 = vmatprep.subr.bf16.mxu0 0
    %1927 = vmatpush1.bf16.msra.mxu0 0
    %1928 = vmatprep.subr.bf16.mxu0 0
    %1929 = vmatpush1.bf16.msra.mxu0 0
    %1930 = vmatprep.subr.bf16.mxu0 0
    %1931 = vmatpush1.bf16.msra.mxu0 0
    %1932 = vmatprep.mubr.bf16.mxu0 0
    %1933 = vmatmul.mubr.bf16.gmra.mrb[0].mxu0 %v1898
    %v1934 = vpop.f32.mrb[0].mxu0
    %v1935 = vadd.f32 0.0, %v1934
    %v1936 = vpop.f32.mrb[0].mxu0
    %v1937 = vpop.f32.mrb[0].mxu0
    %v1938 = vadd.f32 0.0, %v1937
    %v1939 = vpop.f32.mrb[0].mxu0
    %1940 = vdwg.mxu0
    %v1941 = vadd.f32 %v1891, %v1935
    %v1942 = vadd.f32 %v1892, %v1938
    %v1943 = vxor.u32 %v1941, 2147483648
    %v1944 = vxor.u32 %v1942, 2147483648
    %v1945 = vmul.f32 %v1943, 1.442695
    %v1946 = vpow.pop %v1945
    %v1947 = vmul.f32 %v1944, 1.442695
    %v1948 = vpow.pop %v1947
    %v1949 = vadd.f32 %v1946, 1.0
    %v1950 = vadd.f32 %v1948, 1.0
    %v1951 = vrcp.pop %v1949
    %v1952 = vmul.f32 1.0, %v1951
    %v1953 = vrcp.pop %v1950
    %v1954 = vmul.f32 1.0, %v1953
    %v1955 = vtanh.pop %v1941
    %v1956 = vtanh.pop %v1942
    %v1957 = vmul.f32 %v1952, %v1757
    %v1958 = vmul.f32 %v1954, %v1758
    %1961 = vrot.lane.b32.xlu0 %v1955, 64
    %v1962 = vpop.permute.xlu0 %1961
    %1963 = vrot.lane.b32.xlu0 %v1956, 64
    %v1964 = vpop.permute.xlu0 %1963
    %v1967 = vmul.f32 %v1952, %v1962
    %v1968 = vmul.f32 %v1954, %v1964
    %1971 = vrot.lane.b32.xlu0 %v1967, 32
    %v1972 = vpop.permute.xlu0 %1971
    %1973 = vrot.lane.b32.xlu0 %v1968, 32
    %v1974 = vpop.permute.xlu0 %1973
    %v1977 = vadd.f32 %v1957, %v1972
    %v1978 = vadd.f32 %v1958, %v1974
    %v1979 = vtanh.pop %v1977
    %v1980 = vtanh.pop %v1978
    %1983 = vrot.lane.b32.xlu0 %v1979, 64
    %v1984 = vpop.permute.xlu0 %1983
    %1985 = vrot.lane.b32.xlu0 %v1980, 64
    %v1986 = vpop.permute.xlu0 %1985
    %v1989 = vmul.f32 %v1952, %v1984
    %v1990 = vmul.f32 %v1954, %v1986
    %v1991 = vadd.f32 %v1888, %v1989
    %v1992 = vadd.f32 %v1889, %v1990
    %1995 = vrot.lane.b32.xlu0 %v1991, 32
    %v1996 = vpop.permute.xlu0 %1995
    %1997 = vrot.lane.b32.xlu0 %v1992, 32
    %v1998 = vpop.permute.xlu0 %1997
    %v2001 = vsel %vm175, %v1996, 0.0
    %2002 = vadd.xlane.f32.xlu0 %v2001
    %v2003 = vpop.xlane.xlu0 %2002
    %v2004 = vsel %vm175, %v1998, 0.0
    %2005 = vadd.xlane.f32.xlu0 %v2004
    %v2006 = vpop.xlane.xlu0 %2005
    %v2007 = vadd.f32 %v1787, %v2003
    %v2008 = vadd.f32 %v1788, %v2006
    %s2009 = scalar_lea.vmem [#allocation2], 112
    %v2010 = vld [vmem:[%s2009] sm:$0xff]
    %v2011 = vld [vmem:[%s2009 + $0x8] sm:$0xff]
    %v2012 = vpack.c.bf16 %v1889, %v1888
    %2014 = vrot.lane.b32.xlu0 %v2012, 32
    %v2015 = vpop.permute.xlu0 %2014
    %v2017 = vsel %vm175, %v2015, 0
    %2019 = vmatprep.subr.bf16.mxu0 0
    %2020 = vmatpush1.bf16.msra.mxu0 %v467
    %2021 = vmatprep.subr.bf16.mxu0 0
    %2022 = vmatpush1.bf16.msra.mxu0 %v468
    %2023 = vmatprep.subr.bf16.mxu0 0
    %2024 = vmatpush1.bf16.msra.mxu0 0
    %2025 = vmatprep.subr.bf16.mxu0 0
    %2026 = vmatpush1.bf16.msra.mxu0 0
    %2027 = vmatprep.subr.bf16.mxu0 0
    %2028 = vmatpush1.bf16.msra.mxu0 0
    %2029 = vmatprep.subr.bf16.mxu0 0
    %2030 = vmatpush1.bf16.msra.mxu0 0
    %2031 = vmatprep.subr.bf16.mxu0 0
    %2032 = vmatpush1.bf16.msra.mxu0 0
    %2033 = vmatprep.subr.bf16.mxu0 0
    %2034 = vmatpush1.bf16.msra.mxu0 0
    %2035 = vmatprep.subr.bf16.mxu0 0
    %2036 = vmatpush1.bf16.msra.mxu0 0
    %2037 = vmatprep.subr.bf16.mxu0 0
    %2038 = vmatpush1.bf16.msra.mxu0 0
    %2039 = vmatprep.subr.bf16.mxu0 0
    %2040 = vmatpush1.bf16.msra.mxu0 0
    %2041 = vmatprep.subr.bf16.mxu0 0
    %2042 = vmatpush1.bf16.msra.mxu0 0
    %2043 = vmatprep.subr.bf16.mxu0 0
    %2044 = vmatpush1.bf16.msra.mxu0 0
    %2045 = vmatprep.subr.bf16.mxu0 0
    %2046 = vmatpush1.bf16.msra.mxu0 0
    %2047 = vmatprep.subr.bf16.mxu0 0
    %2048 = vmatpush1.bf16.msra.mxu0 0
    %2049 = vmatprep.subr.bf16.mxu0 0
    %2050 = vmatpush1.bf16.msra.mxu0 0
    %2051 = vmatprep.mubr.bf16.mxu0 0
    %2052 = vmatmul.mubr.bf16.gmra.mrb[0].mxu0 %v2017
    %v2053 = vpop.f32.mrb[0].mxu0
    %v2054 = vadd.f32 0.0, %v2053
    %v2055 = vpop.f32.mrb[0].mxu0
    %v2056 = vpop.f32.mrb[0].mxu0
    %v2057 = vadd.f32 0.0, %v2056
    %v2058 = vpop.f32.mrb[0].mxu0
    %2059 = vdwg.mxu0
    %v2060 = vadd.f32 %v2010, %v2054
    %v2061 = vadd.f32 %v2011, %v2057
    %v2062 = vxor.u32 %v2060, 2147483648
    %v2063 = vxor.u32 %v2061, 2147483648
    %v2064 = vmul.f32 %v2062, 1.442695
    %v2065 = vpow.pop %v2064
    %v2066 = vmul.f32 %v2063, 1.442695
    %v2067 = vpow.pop %v2066
    %v2068 = vadd.f32 %v2065, 1.0
    %v2069 = vadd.f32 %v2067, 1.0
    %v2070 = vrcp.pop %v2068
    %v2071 = vmul.f32 1.0, %v2070
    %v2072 = vrcp.pop %v2069
    %v2073 = vmul.f32 1.0, %v2072
    %v2074 = vtanh.pop %v2060
    %v2075 = vtanh.pop %v2061
    %v2076 = vmul.f32 %v2071, %v1876
    %v2077 = vmul.f32 %v2073, %v1877
    %2080 = vrot.lane.b32.xlu0 %v2074, 64
    %v2081 = vpop.permute.xlu0 %2080
    %2082 = vrot.lane.b32.xlu0 %v2075, 64
    %v2083 = vpop.permute.xlu0 %2082
    %v2086 = vmul.f32 %v2071, %v2081
    %v2087 = vmul.f32 %v2073, %v2083
    %2090 = vrot.lane.b32.xlu0 %v2086, 32
    %v2091 = vpop.permute.xlu0 %2090
    %2092 = vrot.lane.b32.xlu0 %v2087, 32
    %v2093 = vpop.permute.xlu0 %2092
    %v2096 = vadd.f32 %v2076, %v2091
    %v2097 = vadd.f32 %v2077, %v2093
    %v2098 = vtanh.pop %v2096
    %v2099 = vtanh.pop %v2097
    %2102 = vrot.lane.b32.xlu0 %v2098, 64
    %v2103 = vpop.permute.xlu0 %2102
    %2104 = vrot.lane.b32.xlu0 %v2099, 64
    %v2105 = vpop.permute.xlu0 %2104
    %v2108 = vmul.f32 %v2071, %v2103
    %v2109 = vmul.f32 %v2073, %v2105
    %v2110 = vld [vmem:[#allocation3] sm:$0xff]
    %v2111 = vld [vmem:[#allocation3 + $0x8] sm:$0xff]
    %v2112 = vpack.c.bf16 %v1990, %v1989
    %2114 = vrot.lane.b32.xlu0 %v2112, 32
    %v2115 = vpop.permute.xlu0 %2114
    %v2117 = vsel %vm175, %v2115, 0
    %2119 = vmatprep.subr.bf16.mxu0 0
    %2120 = vmatpush1.bf16.msra.mxu0 %v576
    %2121 = vmatprep.subr.bf16.mxu0 0
    %2122 = vmatpush1.bf16.msra.mxu0 %v577
    %2123 = vmatprep.subr.bf16.mxu0 0
    %2124 = vmatpush1.bf16.msra.mxu0 0
    %2125 = vmatprep.subr.bf16.mxu0 0
    %2126 = vmatpush1.bf16.msra.mxu0 0
    %2127 = vmatprep.subr.bf16.mxu0 0
    %2128 = vmatpush1.bf16.msra.mxu0 0
    %2129 = vmatprep.subr.bf16.mxu0 0
    %2130 = vmatpush1.bf16.msra.mxu0 0
    %2131 = vmatprep.subr.bf16.mxu0 0
    %2132 = vmatpush1.bf16.msra.mxu0 0
    %2133 = vmatprep.subr.bf16.mxu0 0
    %2134 = vmatpush1.bf16.msra.mxu0 0
    %2135 = vmatprep.subr.bf16.mxu0 0
    %2136 = vmatpush1.bf16.msra.mxu0 0
    %2137 = vmatprep.subr.bf16.mxu0 0
    %2138 = vmatpush1.bf16.msra.mxu0 0
    %2139 = vmatprep.subr.bf16.mxu0 0
    %2140 = vmatpush1.bf16.msra.mxu0 0
    %2141 = vmatprep.subr.bf16.mxu0 0
    %2142 = vmatpush1.bf16.msra.mxu0 0
    %2143 = vmatprep.subr.bf16.mxu0 0
    %2144 = vmatpush1.bf16.msra.mxu0 0
    %2145 = vmatprep.subr.bf16.mxu0 0
    %2146 = vmatpush1.bf16.msra.mxu0 0
    %2147 = vmatprep.subr.bf16.mxu0 0
    %2148 = vmatpush1.bf16.msra.mxu0 0
    %2149 = vmatprep.subr.bf16.mxu0 0
    %2150 = vmatpush1.bf16.msra.mxu0 0
    %2151 = vmatprep.mubr.bf16.mxu0 0
    %2152 = vmatmul.mubr.bf16.gmra.mrb[0].mxu0 %v2117
    %v2153 = vpop.f32.mrb[0].mxu0
    %v2154 = vadd.f32 0.0, %v2153
    %v2155 = vpop.f32.mrb[0].mxu0
    %v2156 = vpop.f32.mrb[0].mxu0
    %v2157 = vadd.f32 0.0, %v2156
    %v2158 = vpop.f32.mrb[0].mxu0
    %2159 = vdwg.mxu0
    %v2160 = vadd.f32 %v2110, %v2154
    %v2161 = vadd.f32 %v2111, %v2157
    %v2162 = vxor.u32 %v2160, 2147483648
    %v2163 = vxor.u32 %v2161, 2147483648
    %v2164 = vmul.f32 %v2162, 1.442695
    %v2165 = vpow.pop %v2164
    %v2166 = vmul.f32 %v2163, 1.442695
    %v2167 = vpow.pop %v2166
    %v2168 = vadd.f32 %v2165, 1.0
    %v2169 = vadd.f32 %v2167, 1.0
    %v2170 = vrcp.pop %v2168
    %v2171 = vmul.f32 1.0, %v2170
    %v2172 = vrcp.pop %v2169
    %v2173 = vmul.f32 1.0, %v2172
    %v2174 = vtanh.pop %v2160
    %v2175 = vtanh.pop %v2161
    %v2176 = vmul.f32 %v2171, %v1977
    %v2177 = vmul.f32 %v2173, %v1978
    %2180 = vrot.lane.b32.xlu0 %v2174, 64
    %v2181 = vpop.permute.xlu0 %2180
    %2182 = vrot.lane.b32.xlu0 %v2175, 64
    %v2183 = vpop.permute.xlu0 %2182
    %v2186 = vmul.f32 %v2171, %v2181
    %v2187 = vmul.f32 %v2173, %v2183
    %2190 = vrot.lane.b32.xlu0 %v2186, 32
    %v2191 = vpop.permute.xlu0 %2190
    %2192 = vrot.lane.b32.xlu0 %v2187, 32
    %v2193 = vpop.permute.xlu0 %2192
    %v2196 = vadd.f32 %v2176, %v2191
    %v2197 = vadd.f32 %v2177, %v2193
    %v2198 = vtanh.pop %v2196
    %v2199 = vtanh.pop %v2197
    %2202 = vrot.lane.b32.xlu0 %v2198, 64
    %v2203 = vpop.permute.xlu0 %2202
    %2204 = vrot.lane.b32.xlu0 %v2199, 64
    %v2205 = vpop.permute.xlu0 %2204
    %v2208 = vmul.f32 %v2171, %v2203
    %v2209 = vmul.f32 %v2173, %v2205
    %v2210 = vadd.f32 %v2108, %v2208
    %v2211 = vadd.f32 %v2109, %v2209
    %2214 = vrot.lane.b32.xlu0 %v2210, 32
    %v2215 = vpop.permute.xlu0 %2214
    %2216 = vrot.lane.b32.xlu0 %v2211, 32
    %v2217 = vpop.permute.xlu0 %2216
    %v2220 = vsel %vm175, %v2215, 0.0
    %2221 = vadd.xlane.f32.xlu0 %v2220
    %v2222 = vpop.xlane.xlu0 %2221
    %v2223 = vsel %vm175, %v2217, 0.0
    %2224 = vadd.xlane.f32.xlu0 %v2223
    %v2225 = vpop.xlane.xlu0 %2224
    %v2226 = vadd.f32 %v2007, %v2222
    %v2227 = vadd.f32 %v2008, %v2225
    %v2228 = vmul.f32 %v2226, 0.015625
    %v2229 = vmul.f32 %v2227, 0.015625
    %2230 = vst [vmem:[#allocation13] sm:$0xff] %v2228
    %2231 = vst [vmem:[#allocation13 + $0x8] sm:$0xff] %v2229
    // Predicated region
    $region50: #{tpu_custom_call.1} parent=1 // pred_check
      _
    $region51: #{tpu_custom_call.1} parent=1 // pred_check_branch
      %2233 = sbr.rel (0) target = $region53
    $region52: #{tpu_custom_call.1} parent=1 // pred_region
      %s2235 = ssub.s32 256, 256
      %2236 = vsyncadd [#allocation6], %s2235
      %s2237 = sshll.u32 [#allocation13], 4
      %s2238 = int_to_ptr.vmem [resolvable:$true] %s2237
      %2243 = dma.vmem_to_hbm [thread:$0]  %s2238, 256, %s7, [#allocation6], 128, 128, 8
    $region53: #{tpu_custom_call.1} parent=1 // pred_fallthru
      _
    // Predicated region
    $region54: #{tpu_custom_call.1} parent=1 // pred_check
      _
    $region55: #{tpu_custom_call.1} parent=1 // pred_check_branch
      %2245 = sbr.rel (0) target = $region57
    $region56: #{tpu_custom_call.1} parent=1 // pred_region
      %2246 = dma.done [#allocation6], 256
    $region57: #{tpu_custom_call.1} parent=1 // pred_fallthru
      _
    %2247 = vsyncpa [#allocation5], 1
    %2248 = vsyncpa [#allocation8], 1
    %2249 = vsyncpa [#allocation11], 1
    %2250 = vsyncpa [#allocation6], 1

</llo_original>
